<compile_context>
chip_gen: v6e
topology: v6e:2x2x1
jax: 0.10.0
libtpu: 0.0.40
codegen_flags: <defaults>
</compile_context>

<pallas_src>
import functools

import jax
import jax.numpy as jnp
from jax.experimental import pallas as pl
from jax.experimental.pallas import tpu as pltpu


def _round_up(x, m):
    return ((x + m - 1) // m) * m


def _pick_tile(n_pad, target):
    """Largest multiple of 128 <= target that divides n_pad (n_pad % 128 == 0)."""
    t = max(128, min(target, n_pad))
    t = (t // 128) * 128
    while n_pad % t != 0:
        t -= 128
    return t


def rgcn_layer_kernel(x_src_ref, a_ref, wrel_ref, wroot_ref, x_dst_ref, b_ref,
                      invdeg_ref, o_ref, acc_ref, msg_ref):
    """One RGCNConv layer + ReLU.

    grid = (m: dst tile [parallel], k: src tile [arbitrary], r: relation [arbitrary])
    o_ref   : (tm, Fout) bf16 -- written once per dst tile at the final (k, r) step
    acc_ref : (tm, Fout) f32  -- resident output accumulator across (k, r)
    msg_ref : (R, tm, Fin) f32 -- per-relation aggregation scratch across k
    """
    k = pl.program_id(1)
    r = pl.program_id(2)
    last_k = pl.num_programs(1) - 1
    last_r = pl.num_programs(2) - 1

    # Initialize accumulators once per dst tile: root transform + bias; zero messages.
    @pl.when(jnp.logical_and(k == 0, r == 0))
    def _():
        acc_ref[...] = (
            jnp.dot(x_dst_ref[...], wroot_ref[...],
                    preferred_element_type=jnp.float32)
            + b_ref[...]
        )
        msg_ref[...] = jnp.zeros_like(msg_ref)

    # Dominant matmul: aggregate int8 edge-count adjacency tile against src features.
    # In-kernel int8 -> bf16 upcast (VPU has slack; int8 halves the A HBM stream).
    a_bf16 = a_ref[0].astype(jnp.bfloat16)
    msg_ref[r] = msg_ref[r] + jnp.dot(a_bf16, x_src_ref[...],
                                      preferred_element_type=jnp.float32)

    # End of the k sweep for relation r: mean-normalize with the f32 per-dst-row
    # 1/deg, then apply the hoisted relation transform (once per relation per tile).
    @pl.when(k == last_k)
    def _():
        scaled = (msg_ref[r] * invdeg_ref[r]).astype(jnp.bfloat16)
        acc_ref[...] += jnp.dot(scaled, wrel_ref[r],
                                preferred_element_type=jnp.float32)

    # Finalize with ReLU and bf16 cast on the very last (k, r) step.
    @pl.when(jnp.logical_and(k == last_k, r == last_r))
    def _():
        o_ref[...] = jnp.maximum(acc_ref[...], 0.0).astype(o_ref.dtype)


def rgcn_layer(x_p, adj, inv_deg, w_rel, w_root, bias, *,
               tm_target=1024, tk_target=2048):
    """x_p: (N_pad, f_in_pad) bf16 padded activations.
    adj: (R, N_pad, N_pad) int8 edge counts (dst x src).
    inv_deg: (R, N_pad, 1) f32 per-(relation, dst) 1/degree.
    Returns (N_pad, f_out_pad) bf16 padded activations (post-ReLU).
    """
    n_pad, f_in_pad = x_p.shape
    num_rel = adj.shape[0]
    f_in, f_out = w_root.shape
    f_out_pad = _round_up(f_out, 128)

    # Tile selection: as big as practical (amortize per-step overhead), but keep
    # >= 2 dst tiles when possible so the "parallel" m axis can shard across the
    # two v7x TensorCores.
    tm_cap = tm_target if n_pad < 256 else min(tm_target, n_pad // 2)
    tm = _pick_tile(n_pad, tm_cap)
    tk = _pick_tile(n_pad, tk_target)

    # Pad + cast weight operands to bf16 (lane-dense 128-wide feature dims).
    wrel_p = jnp.zeros((num_rel, f_in_pad, f_out_pad), jnp.bfloat16)
    wrel_p = wrel_p.at[:, :f_in, :f_out].set(w_rel.astype(jnp.bfloat16))
    wroot_p = jnp.zeros((f_in_pad, f_out_pad), jnp.bfloat16)
    wroot_p = wroot_p.at[:f_in, :f_out].set(w_root.astype(jnp.bfloat16))
    b_p = jnp.zeros((1, f_out_pad), jnp.float32)
    b_p = b_p.at[0, :f_out].set(bias.astype(jnp.float32))

    out = pl.pallas_call(
        rgcn_layer_kernel,
        out_shape=jax.ShapeDtypeStruct((n_pad, f_out_pad), jnp.bfloat16),
        grid_spec=pltpu.PrefetchScalarGridSpec(
            num_scalar_prefetch=0,
            grid=(n_pad // tm, n_pad // tk, num_rel),
            in_specs=[
                # x at src rows: index depends only on k -> streamed once per (m, k),
                # not once per relation.
                pl.BlockSpec((tk, f_in_pad), lambda m, k, r: (k, 0)),
                # A_r tile (dst x src), int8 counts -- the dominant HBM stream.
                pl.BlockSpec((1, tm, tk), lambda m, k, r: (r, m, k)),
                # All R relation weights fully VMEM-resident.
                pl.BlockSpec((num_rel, f_in_pad, f_out_pad),
                             lambda m, k, r: (0, 0, 0)),
                # W_root (resident).
                pl.BlockSpec((f_in_pad, f_out_pad), lambda m, k, r: (0, 0)),
                # x at dst rows (root transform operand).
                pl.BlockSpec((tm, f_in_pad), lambda m, k, r: (m, 0)),
                # bias.
                pl.BlockSpec((1, f_out_pad), lambda m, k, r: (0, 0)),
                # f32 1/deg per (relation, dst row) -- changes only with m.
                pl.BlockSpec((num_rel, tm, 1), lambda m, k, r: (0, m, 0)),
            ],
            out_specs=pl.BlockSpec((tm, f_out_pad), lambda m, k, r: (m, 0)),
            scratch_shapes=[
                pltpu.VMEM((tm, f_out_pad), jnp.float32),          # acc
                pltpu.VMEM((num_rel, tm, f_in_pad), jnp.float32),  # per-relation msg
            ],
        ),
        compiler_params=pltpu.CompilerParams(
            dimension_semantics=("parallel", "arbitrary", "arbitrary"),
            vmem_limit_bytes=48 * 1024 * 1024,
        ),
    )(x_p, adj, wrel_p, wroot_p, x_p, b_p, inv_deg)

    return out


def build_adj_and_invdeg(edge_index, edge_type, num_relations, n_pad):
    """int8 edge-count adjacency + f32 per-(relation, dst) inverse degree (glue)."""
    src = edge_index[0]
    dst = edge_index[1]
    # Edge counts scattered directly into int8 (exactly representable; halves the
    # dominant HBM stream vs bf16). No dense normalize pass -- 1/deg is applied
    # in-kernel in f32.
    adj = jnp.zeros((num_relations, n_pad, n_pad), jnp.int8)
    adj = adj.at[edge_type, dst, src].add(jnp.ones_like(edge_type, jnp.int8))
    # Per-(relation, dst) in-degree from an edge-wise scatter (no dense reduction).
    deg = jnp.zeros((num_relations, n_pad), jnp.float32)
    deg = deg.at[edge_type, dst].add(1.0)
    inv_deg = (1.0 / jnp.maximum(deg, 1.0))[:, :, None]  # (R, n_pad, 1) f32
    return adj, inv_deg


def init_params(key, num_node_features, hidden_channels, num_relations):
    """Deterministic Glorot-style init for 3 RGCNConv layers."""
    dims = [
        (num_node_features, hidden_channels),
        (hidden_channels, hidden_channels),
        (hidden_channels, hidden_channels),
    ]
    params = []
    for f_in, f_out in dims:
        key, k1, k2 = jax.random.split(key, 3)
        scale = jnp.sqrt(2.0 / (f_in + f_out))
        w_rel = jax.random.normal(k1, (num_relations, f_in, f_out), jnp.float32) * scale
        w_root = jax.random.normal(k2, (f_in, f_out), jnp.float32) * scale
        bias = jnp.zeros((f_out,), jnp.float32)
        params.append((w_rel, w_root, bias))
    return params


@functools.partial(jax.jit, static_argnames=("num_relations",))
def hetero_rgcn_forward(x, edge_index, edge_type, params, num_relations):
    num_nodes, f_in = x.shape
    n_pad = _round_up(num_nodes, 128)
    f_in_pad = _round_up(f_in, 128)

    # Adjacency/degrees shared by all three layers: build once.
    adj, inv_deg = build_adj_and_invdeg(edge_index, edge_type, num_relations, n_pad)

    # Pad + cast the input activations once; layers carry already-padded bf16
    # activations (no per-layer re-pad / re-cast passes between pallas_calls).
    x_p = jnp.zeros((n_pad, f_in_pad), jnp.bfloat16)
    x_p = x_p.at[:num_nodes, :f_in].set(x.astype(jnp.bfloat16))

    for (w_rel, w_root, bias) in params:
        x_p = rgcn_layer(x_p, adj, inv_deg, w_rel, w_root, bias)
        # dropout (p=0.5) is identity in eval mode

    f_out = params[-1][1].shape[1]
    return x_p[:num_nodes, :f_out].astype(jnp.float32)


if __name__ == "__main__":
    num_nodes = 16
    num_node_features = 8
    hidden_channels = 32
    num_relations = 3
    num_edges = 40

    key = jax.random.PRNGKey(0)
    k_x, k_src, k_dst, k_rel, k_params = jax.random.split(key, 5)

    x = jax.random.normal(k_x, (num_nodes, num_node_features), jnp.float32)
    src = jax.random.randint(k_src, (num_edges,), 0, num_nodes, jnp.int32)
    dst = jax.random.randint(k_dst, (num_edges,), 0, num_nodes, jnp.int32)
    edge_index = jnp.stack([src, dst], axis=0)                 # (2, E)
    edge_type = jax.random.randint(k_rel, (num_edges,), 0, num_relations, jnp.int32)

    params = init_params(k_params, num_node_features, hidden_channels, num_relations)

    out = hetero_rgcn_forward(x, edge_index, edge_type, params, num_relations)
    out = jax.block_until_ready(out)
    assert out.shape == (num_nodes, hidden_channels)
    assert bool(jnp.all(jnp.isfinite(out)))
    print("KERNEL_OK")
</pallas_src>

<mosaic_0001>
module attributes {stable_mosaic.version = 11 : i64} {
  func.func private @main(%arg0: i32) attributes {dimension_semantics = [#tpu.dimension_semantics<core_parallel>], iteration_bounds = array<i64: 2>, tpu.core_type = #tpu.core_type<sc_scalar_subcore>, window_params = []} {
    return
  }
}

module attributes {stable_mosaic.version = 11 : i64} {
  func.func private @main(%arg0: i32) attributes {dimension_semantics = [#tpu.dimension_semantics<core_parallel>], iteration_bounds = array<i64: 2>, tpu.core_type = #tpu.core_type<sc_scalar_subcore>, window_params = []} {
    return
  }
}

module attributes {stable_mosaic.version = 11 : i64} {
  func.func @rgcn_layer_kernel(%arg0: i32, %arg1: i32, %arg2: i32, %arg3: memref<128x128xbf16, #tpu.memory_space<vmem>>, %arg4: memref<1x128x128xi8, #tpu.memory_space<vmem>>, %arg5: memref<3x128x128xbf16, #tpu.memory_space<vmem>>, %arg6: memref<128x128xbf16, #tpu.memory_space<vmem>>, %arg7: memref<128x128xbf16, #tpu.memory_space<vmem>>, %arg8: memref<1x128xf32, #tpu.memory_space<vmem>>, %arg9: memref<3x128x1xf32, #tpu.memory_space<vmem>>, %arg10: memref<128x128xbf16, #tpu.memory_space<vmem>>, %arg11: memref<128x128xf32, #tpu.memory_space<vmem>>, %arg12: memref<3x128x128xf32, #tpu.memory_space<vmem>>) attributes {dimension_semantics = [#tpu.dimension_semantics<parallel>, #tpu.dimension_semantics<arbitrary>, #tpu.dimension_semantics<arbitrary>], iteration_bounds = array<i64: 1, 1, 3>, scalar_prefetch = 0 : i64, scratch_operands = 2 : i64, tpu.core_type = #tpu.core_type<tc>, window_params = [{transform_indices = @transform_0, window_bounds = array<i64: 128, 128>}, {transform_indices = @transform_1, window_bounds = array<i64: 1, 128, 128>}, {pipeline_mode = #tpu.pipeline_mode<synchronous>, transform_indices = @transform_2, window_bounds = array<i64: 3, 128, 128>}, {pipeline_mode = #tpu.pipeline_mode<synchronous>, transform_indices = @transform_3, window_bounds = array<i64: 128, 128>}, {transform_indices = @transform_4, window_bounds = array<i64: 128, 128>}, {pipeline_mode = #tpu.pipeline_mode<synchronous>, transform_indices = @transform_5, window_bounds = array<i64: 1, 128>}, {transform_indices = @transform_6, window_bounds = array<i64: 3, 128, 1>}, {transform_indices = @transform_7, window_bounds = array<i64: 128, 128>}]} {
    %c0_i32 = arith.constant 0 : i32
    %0 = arith.cmpi eq, %arg1, %c0_i32 : i32
    %c0_i32_0 = arith.constant 0 : i32
    %1 = arith.cmpi eq, %arg2, %c0_i32_0 : i32
    %2 = arith.andi %0, %1 : i1
    %3 = arith.extui %2 : i1 to i32
    %c0_i32_1 = arith.constant 0 : i32
    %4 = arith.cmpi ne, %3, %c0_i32_1 : i32
    scf.if %4 {
      %c0_14 = arith.constant 0 : index
      %c0_15 = arith.constant 0 : index
      %26 = vector.load %arg7[%c0_14, %c0_15] : memref<128x128xbf16, #tpu.memory_space<vmem>>, vector<128x128xbf16>
      %c0_16 = arith.constant 0 : index
      %c0_17 = arith.constant 0 : index
      %27 = vector.load %arg6[%c0_16, %c0_17] : memref<128x128xbf16, #tpu.memory_space<vmem>>, vector<128x128xbf16>
      %cst_18 = arith.constant dense<0.000000e+00> : vector<128x128xf32>
      %28 = tpu.matmul %26, %27, %cst_18 {dimension_numbers = #tpu.dot_dimension_numbers<[1], [0], [0], [1], [0, 0, 1, 1], [], []>} : vector<128x128xbf16>, vector<128x128xbf16>, vector<128x128xf32> -> vector<128x128xf32>
      %c0_19 = arith.constant 0 : index
      %c0_20 = arith.constant 0 : index
      %29 = vector.load %arg8[%c0_19, %c0_20] : memref<1x128xf32, #tpu.memory_space<vmem>>, vector<1x128xf32>
      %30 = vector.broadcast %29 : vector<1x128xf32> to vector<128x128xf32>
      %31 = arith.addf %28, %30 : vector<128x128xf32>
      %c0_21 = arith.constant 0 : index
      %c0_22 = arith.constant 0 : index
      %32 = vector.load %arg11[%c0_21, %c0_22] : memref<128x128xf32, #tpu.memory_space<vmem>>, vector<128x128xf32>
      tpu.vector_store %arg11[%c0_21, %c0_22], %31 {strides = array<i32>} : memref<128x128xf32, #tpu.memory_space<vmem>>, vector<128x128xf32>,
      %cst_23 = arith.constant 0.000000e+00 : f32
      %33 = vector.broadcast %cst_23 : f32 to vector<3x128x128xf32>
      %c0_24 = arith.constant 0 : index
      %c0_25 = arith.constant 0 : index
      %c0_26 = arith.constant 0 : index
      %34 = vector.load %arg12[%c0_24, %c0_25, %c0_26] : memref<3x128x128xf32, #tpu.memory_space<vmem>>, vector<3x128x128xf32>
      tpu.vector_store %arg12[%c0_24, %c0_25, %c0_26], %33 {strides = array<i32>} : memref<3x128x128xf32, #tpu.memory_space<vmem>>, vector<3x128x128xf32>,
    } else {
    }
    %c0 = arith.constant 0 : index
    %c0_2 = arith.constant 0 : index
    %c0_3 = arith.constant 0 : index
    %5 = vector.load %arg4[%c0, %c0_2, %c0_3] : memref<1x128x128xi8, #tpu.memory_space<vmem>>, vector<1x128x128xi8>
    %6 = vector.shape_cast %5 : vector<1x128x128xi8> to vector<128x128xi8>
    %7 = arith.sitofp %6 : vector<128x128xi8> to vector<128x128xbf16>
    %8 = arith.index_cast %arg2 : i32 to index
    %c0_4 = arith.constant 0 : index
    %c0_5 = arith.constant 0 : index
    %9 = vector.load %arg12[%8, %c0_4, %c0_5] : memref<3x128x128xf32, #tpu.memory_space<vmem>>, vector<1x128x128xf32>
    %10 = vector.shape_cast %9 : vector<1x128x128xf32> to vector<128x128xf32>
    %c0_6 = arith.constant 0 : index
    %c0_7 = arith.constant 0 : index
    %11 = vector.load %arg3[%c0_6, %c0_7] : memref<128x128xbf16, #tpu.memory_space<vmem>>, vector<128x128xbf16>
    %cst = arith.constant dense<0.000000e+00> : vector<128x128xf32>
    %12 = tpu.matmul %7, %11, %cst {dimension_numbers = #tpu.dot_dimension_numbers<[1], [0], [0], [1], [0, 0, 1, 1], [], []>} : vector<128x128xbf16>, vector<128x128xbf16>, vector<128x128xf32> -> vector<128x128xf32>
    %13 = arith.addf %10, %12 : vector<128x128xf32>
    %14 = arith.index_cast %arg2 : i32 to index
    %c0_8 = arith.constant 0 : index
    %c0_9 = arith.constant 0 : index
    %15 = vector.load %arg12[%14, %c0_8, %c0_9] : memref<3x128x128xf32, #tpu.memory_space<vmem>>, vector<1x128x128xf32>
    %16 = vector.shape_cast %15 : vector<1x128x128xf32> to vector<128x128xf32>
    %17 = vector.shape_cast %13 : vector<128x128xf32> to vector<1x128x128xf32>
    tpu.vector_store %arg12[%14, %c0_8, %c0_9], %17 {strides = array<i32>} : memref<3x128x128xf32, #tpu.memory_space<vmem>>, vector<1x128x128xf32>,
    %c0_i32_10 = arith.constant 0 : i32
    %18 = arith.cmpi eq, %arg1, %c0_i32_10 : i32
    %19 = arith.extui %18 : i1 to i32
    %c0_i32_11 = arith.constant 0 : i32
    %20 = arith.cmpi ne, %19, %c0_i32_11 : i32
    scf.if %20 {
      %26 = arith.index_cast %arg2 : i32 to index
      %c0_14 = arith.constant 0 : index
      %c0_15 = arith.constant 0 : index
      %27 = vector.load %arg12[%26, %c0_14, %c0_15] : memref<3x128x128xf32, #tpu.memory_space<vmem>>, vector<1x128x128xf32>
      %28 = vector.shape_cast %27 : vector<1x128x128xf32> to vector<128x128xf32>
      %29 = arith.index_cast %arg2 : i32 to index
      %c0_16 = arith.constant 0 : index
      %c0_17 = arith.constant 0 : index
      %30 = vector.load %arg9[%29, %c0_16, %c0_17] : memref<3x128x1xf32, #tpu.memory_space<vmem>>, vector<1x128x1xf32>
      %31 = vector.shape_cast %30 : vector<1x128x1xf32> to vector<128x1xf32>
      %32 = vector.broadcast %31 : vector<128x1xf32> to vector<128x128xf32>
      %33 = arith.mulf %28, %32 : vector<128x128xf32>
      %34 = arith.truncf %33 : vector<128x128xf32> to vector<128x128xbf16>
      %c0_18 = arith.constant 0 : index
      %c0_19 = arith.constant 0 : index
      %35 = vector.load %arg11[%c0_18, %c0_19] : memref<128x128xf32, #tpu.memory_space<vmem>>, vector<128x128xf32>
      %36 = arith.index_cast %arg2 : i32 to index
      %c0_20 = arith.constant 0 : index
      %c0_21 = arith.constant 0 : index
      %37 = vector.load %arg5[%36, %c0_20, %c0_21] : memref<3x128x128xbf16, #tpu.memory_space<vmem>>, vector<1x128x128xbf16>
      %38 = vector.shape_cast %37 : vector<1x128x128xbf16> to vector<128x128xbf16>
      %cst_22 = arith.constant dense<0.000000e+00> : vector<128x128xf32>
      %39 = tpu.matmul %34, %38, %cst_22 {dimension_numbers = #tpu.dot_dimension_numbers<[1], [0], [0], [1], [0, 0, 1, 1], [], []>} : vector<128x128xbf16>, vector<128x128xbf16>, vector<128x128xf32> -> vector<128x128xf32>
      %40 = arith.addf %35, %39 : vector<128x128xf32>
      %c0_23 = arith.constant 0 : index
      %c0_24 = arith.constant 0 : index
      %41 = vector.load %arg11[%c0_23, %c0_24] : memref<128x128xf32, #tpu.memory_space<vmem>>, vector<128x128xf32>
      tpu.vector_store %arg11[%c0_23, %c0_24], %40 {strides = array<i32>} : memref<128x128xf32, #tpu.memory_space<vmem>>, vector<128x128xf32>,
    } else {
    }
    %c0_i32_12 = arith.constant 0 : i32
    %21 = arith.cmpi eq, %arg1, %c0_i32_12 : i32
    %c2_i32 = arith.constant 2 : i32
    %22 = arith.cmpi eq, %arg2, %c2_i32 : i32
    %23 = arith.andi %21, %22 : i1
    %24 = arith.extui %23 : i1 to i32
    %c0_i32_13 = arith.constant 0 : i32
    %25 = arith.cmpi ne, %24, %c0_i32_13 : i32
    scf.if %25 {
      %c0_14 = arith.constant 0 : index
      %c0_15 = arith.constant 0 : index
      %26 = vector.load %arg11[%c0_14, %c0_15] : memref<128x128xf32, #tpu.memory_space<vmem>>, vector<128x128xf32>
      %cst_16 = arith.constant 0.000000e+00 : f32
      %27 = vector.broadcast %cst_16 : f32 to vector<128x128xf32>
      %28 = arith.maximumf %26, %27 : vector<128x128xf32>
      %29 = arith.truncf %28 : vector<128x128xf32> to vector<128x128xbf16>
      %c0_17 = arith.constant 0 : index
      %c0_18 = arith.constant 0 : index
      %30 = vector.load %arg10[%c0_17, %c0_18] : memref<128x128xbf16, #tpu.memory_space<vmem>>, vector<128x128xbf16>
      tpu.vector_store %arg10[%c0_17, %c0_18], %29 {strides = array<i32>} : memref<128x128xbf16, #tpu.memory_space<vmem>>, vector<128x128xbf16>,
    } else {
    }
    return
  }
  func.func @transform_0(%arg0: i32, %arg1: i32, %arg2: i32) -> (i32, i32) {
    %c0_i32 = arith.constant 0 : i32
    %c0_i32_0 = arith.constant 0 : i32
    return %arg1, %c0_i32 : i32, i32
  }
  func.func @transform_1(%arg0: i32, %arg1: i32, %arg2: i32) -> (i32, i32, i32) {
    %c0_i32 = arith.constant 0 : i32
    return %arg2, %arg0, %arg1 : i32, i32, i32
  }
  func.func @transform_2(%arg0: i32, %arg1: i32, %arg2: i32) -> (i32, i32, i32) {
    %c0_i32 = arith.constant 0 : i32
    %c0_i32_0 = arith.constant 0 : i32
    %c0_i32_1 = arith.constant 0 : i32
    %c0_i32_2 = arith.constant 0 : i32
    return %c0_i32, %c0_i32_0, %c0_i32_1 : i32, i32, i32
  }
  func.func @transform_3(%arg0: i32, %arg1: i32, %arg2: i32) -> (i32, i32) {
    %c0_i32 = arith.constant 0 : i32
    %c0_i32_0 = arith.constant 0 : i32
    %c0_i32_1 = arith.constant 0 : i32
    return %c0_i32, %c0_i32_0 : i32, i32
  }
  func.func @transform_4(%arg0: i32, %arg1: i32, %arg2: i32) -> (i32, i32) {
    %c0_i32 = arith.constant 0 : i32
    %c0_i32_0 = arith.constant 0 : i32
    return %arg0, %c0_i32 : i32, i32
  }
  func.func @transform_5(%arg0: i32, %arg1: i32, %arg2: i32) -> (i32, i32) {
    %c0_i32 = arith.constant 0 : i32
    %c0_i32_0 = arith.constant 0 : i32
    %c0_i32_1 = arith.constant 0 : i32
    return %c0_i32, %c0_i32_0 : i32, i32
  }
  func.func @transform_6(%arg0: i32, %arg1: i32, %arg2: i32) -> (i32, i32, i32) {
    %c0_i32 = arith.constant 0 : i32
    %c0_i32_0 = arith.constant 0 : i32
    %c0_i32_1 = arith.constant 0 : i32
    return %c0_i32, %arg0, %c0_i32_0 : i32, i32, i32
  }
  func.func @transform_7(%arg0: i32, %arg1: i32, %arg2: i32) -> (i32, i32) {
    %c0_i32 = arith.constant 0 : i32
    %c0_i32_0 = arith.constant 0 : i32
    return %arg0, %c0_i32 : i32, i32
  }
}

</mosaic_0001>

<llo_original>
// kernel: hetero_rgcn_forward.3
$region0: #{hetero_rgcn_forward.3}
  #allocation0 [shape = 'u32[]', space=smem, size = 0x4, offset = 0x4, fixed_abs, tag = 'smem constant byte address 0x4 - core index']
  #allocation1 [shape = 'u32[144,128]{1,0:T(1,128)}', space=vmem, size = 0x12000, scoped, tag = 'internal scratch']
  #allocation2 [shape = 'f32[128,128]{1,0:T(8,128)}', space=vmem, size = 0x10000, scoped, tag = 'scratch operand']
  #allocation3 [shape = 'f32[3,128,128]{2,1,0:T(8,128)}', space=vmem, size = 0x30000, scoped, tag = 'scratch operand']
  %s0 = inlined_call_operand.vmem [shape: bf16[128,128], index: 0, kind: input, shape index: {}, may-alias: {0,4}]
  %s1 = inlined_call_operand.vmem [shape: s8[3,128,128], index: 1, kind: input, shape index: {}]
  %s2 = inlined_call_operand.vmem [shape: bf16[3,128,128], index: 2, kind: input, shape index: {}]
  %s3 = inlined_call_operand.vmem [shape: bf16[128,128], index: 3, kind: input, shape index: {}]
  %s4 = inlined_call_operand.vmem [shape: bf16[128,128], index: 4, kind: input, shape index: {}, may-alias: {0,4}]
  %s5 = inlined_call_operand.vmem [shape: f32[1,128], index: 5, kind: input, shape index: {}]
  %s6 = inlined_call_operand.vmem [shape: f32[3,128,1], index: 6, kind: input, shape index: {}]
  %s7 = inlined_call_operand.vmem [shape: bf16[128,128], index: 7, kind: output, shape index: {}]
  %s8 = sld [smem:[#allocation0]]
  $region73: #{hetero_rgcn_forward.3} parent=0
    _
  %s10 = ssub.s32 1, %s8
  %s11 = scalar_select 0, %s10, %s8
  loop: start=0, step=1, limit=5
  $region2: #{hetero_rgcn_forward.3} parent=0 // loop_pre_header
    _
  $region3: #{hetero_rgcn_forward.3} parent=0 // loop_header
    %s13 = sphi 0, %s17
    %p14 = scmp.ge.s32.totalorder %s13, 5
    %s20 = sphi 0, %s39
    %s21 = sphi 0, %s35
    %s22 = sphi 0, %s31
    %s23 = sphi 0, %s20
    %s24 = sphi 0, %s21
    %s25 = sphi 0, %s22
    %s26 = sphi 0, %s23
    %s27 = sphi 0, %s24
    %s28 = sphi 0, %s25
    %s42 = sphi 0, %s44
    %s45 = sphi 0, %s42
    %s46 = sphi 0, %s45
    %s62 = sphi 0, %s46
    %s72 = sphi 0, %s74
    %s75 = sphi 0, %s72
    %s76 = sphi 0, %s75
    %s92 = sphi 0, %s76
    %s96 = sphi 0, %s96
    %s98 = sphi 0, %s96
    %s99 = sphi 0, %s98
    %s113 = sphi 0, %s99
    %s117 = sphi 0, %s117
    %s119 = sphi 0, %s117
    %s120 = sphi 0, %s119
    %s134 = sphi 0, %s120
    %s140 = sphi 0, %s142
    %s143 = sphi 0, %s140
    %s144 = sphi 0, %s143
    %s160 = sphi 0, %s144
    %s164 = sphi 0, %s164
    %s166 = sphi 0, %s164
    %s167 = sphi 0, %s166
    %s181 = sphi 0, %s167
    %s187 = sphi 0, %s189
    %s190 = sphi 0, %s187
    %s191 = sphi 0, %s190
    %s207 = sphi 0, %s191
    %s213 = sphi 0, %s215
    %s216 = sphi 0, %s213
    %s217 = sphi 0, %s216
    %s233 = sphi 0, %s217
  $region4: #{hetero_rgcn_forward.3} parent=0 // loop_header_branch
    %16 = sbr.rel (%p14) target = $region8
  $region5: #{hetero_rgcn_forward.3} parent=0 // loop_body
    %s18 = ssub.s32 %s13, 1
    %s19 = ssub.s32 %s13, 2
    %s29 = sadd.s32 1, %s22
    %p30 = scmp.ge.s32.totalorder %s29, 3
    %s31 = scalar_select %p30, 0, %s29
    %s32 = sadd.s32 1, %s21
    %s33 = scalar_select %p30, %s32, %s21
    %p34 = scmp.ge.s32.totalorder %s33, 1
    %s35 = scalar_select %p34, 0, %s33
    %s36 = sadd.s32 1, %s20
    %s37 = scalar_select %p34, %s36, %s20
    %p38 = scmp.ge.s32.totalorder %s37, 1
    %s39 = scalar_select %p38, 0, %s37
    %s40 = ssub.s32 %s21, %s35
    %p41 = scmp.eq.s32.totalorder %s40, 0
    %s43 = sadd.s32 %s42, 1
    %s44 = scalar_select %p41, %s42, %s43
    %p47 = pneg %p41
    %p48 = scmp.eq.s32.totalorder %s13, 2
    %p49 = por %p47, %p48
    %p50 = scmp.ne.s32.totalorder %s42, %s45
    %p51 = scmp.eq.s32.totalorder %s13, 0
    %p52 = por %p50, %p51
    %p53 = scmp.ne.s32.totalorder %s42, %s45
    %p54 = scmp.eq.s32.totalorder %s18, 2
    %p55 = por %p53, %p54
    %p56 = scmp.ne.s32.totalorder %s45, %s46
    %p57 = scmp.eq.s32.totalorder %s18, 0
    %p58 = por %p56, %p57
    %p59 = scmp.ne.s32.totalorder %s45, %s46
    %p60 = scmp.eq.s32.totalorder %s19, 2
    %p61 = por %p59, %p60
    %p63 = scmp.ne.s32.totalorder %s46, %s62
    %p64 = scmp.eq.s32.totalorder %s19, 0
    %p65 = por %p63, %p64
    %s66 = ssub.s32 %s22, %s31
    %s67 = ssub.s32 %s20, %s39
    %s68 = sor.u32 %s66, %s67
    %s69 = ssub.s32 %s21, %s35
    %s70 = sor.u32 %s68, %s69
    %p71 = scmp.eq.s32.totalorder %s70, 0
    %s73 = sadd.s32 %s72, 1
    %s74 = scalar_select %p71, %s72, %s73
    %p77 = pneg %p71
    %p78 = scmp.eq.s32.totalorder %s13, 2
    %p79 = por %p77, %p78
    %p80 = scmp.ne.s32.totalorder %s72, %s75
    %p81 = scmp.eq.s32.totalorder %s13, 0
    %p82 = por %p80, %p81
    %p83 = scmp.ne.s32.totalorder %s72, %s75
    %p84 = scmp.eq.s32.totalorder %s18, 2
    %p85 = por %p83, %p84
    %p86 = scmp.ne.s32.totalorder %s75, %s76
    %p87 = scmp.eq.s32.totalorder %s18, 0
    %p88 = por %p86, %p87
    %p89 = scmp.ne.s32.totalorder %s75, %s76
    %p90 = scmp.eq.s32.totalorder %s19, 2
    %p91 = por %p89, %p90
    %p93 = scmp.ne.s32.totalorder %s76, %s92
    %p94 = scmp.eq.s32.totalorder %s19, 0
    %p95 = por %p93, %p94
    %s97 = sadd.s32 %s96, 1
    %p100 = scmp.eq.s32.totalorder %s13, 2
    %p101 = scmp.ne.s32.totalorder %s96, %s98
    %p102 = scmp.eq.s32.totalorder %s13, 0
    %p103 = por %p101, %p102
    %p104 = scmp.ne.s32.totalorder %s96, %s98
    %p105 = scmp.eq.s32.totalorder %s18, 2
    %p106 = por %p104, %p105
    %p107 = scmp.ne.s32.totalorder %s98, %s99
    %p108 = scmp.eq.s32.totalorder %s18, 0
    %p109 = por %p107, %p108
    %p110 = scmp.ne.s32.totalorder %s98, %s99
    %p111 = scmp.eq.s32.totalorder %s19, 2
    %p112 = por %p110, %p111
    %p114 = scmp.ne.s32.totalorder %s99, %s113
    %p115 = scmp.eq.s32.totalorder %s19, 0
    %p116 = por %p114, %p115
    %s118 = sadd.s32 %s117, 1
    %p121 = scmp.eq.s32.totalorder %s13, 2
    %p122 = scmp.ne.s32.totalorder %s117, %s119
    %p123 = scmp.eq.s32.totalorder %s13, 0
    %p124 = por %p122, %p123
    %p125 = scmp.ne.s32.totalorder %s117, %s119
    %p126 = scmp.eq.s32.totalorder %s18, 2
    %p127 = por %p125, %p126
    %p128 = scmp.ne.s32.totalorder %s119, %s120
    %p129 = scmp.eq.s32.totalorder %s18, 0
    %p130 = por %p128, %p129
    %p131 = scmp.ne.s32.totalorder %s119, %s120
    %p132 = scmp.eq.s32.totalorder %s19, 2
    %p133 = por %p131, %p132
    %p135 = scmp.ne.s32.totalorder %s120, %s134
    %p136 = scmp.eq.s32.totalorder %s19, 0
    %p137 = por %p135, %p136
    %s138 = ssub.s32 %s20, %s39
    %p139 = scmp.eq.s32.totalorder %s138, 0
    %s141 = sadd.s32 %s140, 1
    %s142 = scalar_select %p139, %s140, %s141
    %p145 = pneg %p139
    %p146 = scmp.eq.s32.totalorder %s13, 2
    %p147 = por %p145, %p146
    %p148 = scmp.ne.s32.totalorder %s140, %s143
    %p149 = scmp.eq.s32.totalorder %s13, 0
    %p150 = por %p148, %p149
    %p151 = scmp.ne.s32.totalorder %s140, %s143
    %p152 = scmp.eq.s32.totalorder %s18, 2
    %p153 = por %p151, %p152
    %p154 = scmp.ne.s32.totalorder %s143, %s144
    %p155 = scmp.eq.s32.totalorder %s18, 0
    %p156 = por %p154, %p155
    %p157 = scmp.ne.s32.totalorder %s143, %s144
    %p158 = scmp.eq.s32.totalorder %s19, 2
    %p159 = por %p157, %p158
    %p161 = scmp.ne.s32.totalorder %s144, %s160
    %p162 = scmp.eq.s32.totalorder %s19, 0
    %p163 = por %p161, %p162
    %s165 = sadd.s32 %s164, 1
    %p168 = scmp.eq.s32.totalorder %s13, 2
    %p169 = scmp.ne.s32.totalorder %s164, %s166
    %p170 = scmp.eq.s32.totalorder %s13, 0
    %p171 = por %p169, %p170
    %p172 = scmp.ne.s32.totalorder %s164, %s166
    %p173 = scmp.eq.s32.totalorder %s18, 2
    %p174 = por %p172, %p173
    %p175 = scmp.ne.s32.totalorder %s166, %s167
    %p176 = scmp.eq.s32.totalorder %s18, 0
    %p177 = por %p175, %p176
    %p178 = scmp.ne.s32.totalorder %s166, %s167
    %p179 = scmp.eq.s32.totalorder %s19, 2
    %p180 = por %p178, %p179
    %p182 = scmp.ne.s32.totalorder %s167, %s181
    %p183 = scmp.eq.s32.totalorder %s19, 0
    %p184 = por %p182, %p183
    %s185 = ssub.s32 %s20, %s39
    %p186 = scmp.eq.s32.totalorder %s185, 0
    %s188 = sadd.s32 %s187, 1
    %s189 = scalar_select %p186, %s187, %s188
    %p192 = pneg %p186
    %p193 = scmp.eq.s32.totalorder %s13, 2
    %p194 = por %p192, %p193
    %p195 = scmp.ne.s32.totalorder %s187, %s190
    %p196 = scmp.eq.s32.totalorder %s13, 0
    %p197 = por %p195, %p196
    %p198 = scmp.ne.s32.totalorder %s187, %s190
    %p199 = scmp.eq.s32.totalorder %s18, 2
    %p200 = por %p198, %p199
    %p201 = scmp.ne.s32.totalorder %s190, %s191
    %p202 = scmp.eq.s32.totalorder %s18, 0
    %p203 = por %p201, %p202
    %p204 = scmp.ne.s32.totalorder %s190, %s191
    %p205 = scmp.eq.s32.totalorder %s19, 2
    %p206 = por %p204, %p205
    %p208 = scmp.ne.s32.totalorder %s191, %s207
    %p209 = scmp.eq.s32.totalorder %s19, 0
    %p210 = por %p208, %p209
    %s211 = ssub.s32 %s20, %s39
    %p212 = scmp.eq.s32.totalorder %s211, 0
    %s214 = sadd.s32 %s213, 1
    %s215 = scalar_select %p212, %s213, %s214
    %p218 = pneg %p212
    %p219 = scmp.eq.s32.totalorder %s13, 2
    %p220 = por %p218, %p219
    %p221 = scmp.ne.s32.totalorder %s213, %s216
    %p222 = scmp.eq.s32.totalorder %s13, 0
    %p223 = por %p221, %p222
    %p224 = scmp.ne.s32.totalorder %s213, %s216
    %p225 = scmp.eq.s32.totalorder %s18, 2
    %p226 = por %p224, %p225
    %p227 = scmp.ne.s32.totalorder %s216, %s217
    %p228 = scmp.eq.s32.totalorder %s18, 0
    %p229 = por %p227, %p228
    %p230 = scmp.ne.s32.totalorder %s216, %s217
    %p231 = scmp.eq.s32.totalorder %s19, 2
    %p232 = por %p230, %p231
    %p234 = scmp.ne.s32.totalorder %s217, %s233
    %p235 = scmp.eq.s32.totalorder %s19, 0
    %p236 = por %p234, %p235
    %p237 = scmp.le.s32.totalorder 1, %s13
    %p238 = scmp.lt.s32.totalorder %s13, 4
    %p239 = pnand %p237, %p238
    %p240 = pneg %p239
    // Predicated region
    $region9: #{hetero_rgcn_forward.3} parent=5 // pred_check
      _
    $region10: #{hetero_rgcn_forward.3} parent=5 // pred_check_branch
      %242 = sbr.rel (%p239) target = $region12
    $region11: #{hetero_rgcn_forward.3} parent=5 // pred_region
      %s243 = ssub.s32 %s13, 1
      // Predicated region
      $region13: #{hetero_rgcn_forward.3} parent=11 // pred_check
        %p244 = pneg %p58
      $region14: #{hetero_rgcn_forward.3} parent=11 // pred_check_branch
        %246 = sbr.rel (%p244) target = $region16
      $region15: #{hetero_rgcn_forward.3} parent=11 // pred_region
        %s247 = smul.u32 16, %s24
        %p248 = scmp.lt.s32.totalorder %s247, 15
        %s249 = scalar_select %p248, %s247, 15
        %s250 = smul.addr %s249, 4
        %s251 = scalar_lea.vmem %s0, %s250
        %s252 = smul.u32 16, %s24
      $region16: #{hetero_rgcn_forward.3} parent=11 // pred_fallthru
        _
      // Predicated region
      $region17: #{hetero_rgcn_forward.3} parent=11 // pred_check
        %p253 = pneg %p109
      $region18: #{hetero_rgcn_forward.3} parent=11 // pred_check_branch
        %255 = sbr.rel (%p253) target = $region20
      $region19: #{hetero_rgcn_forward.3} parent=11 // pred_region
        _
      $region20: #{hetero_rgcn_forward.3} parent=11 // pred_fallthru
        _
      // Predicated region
      $region21: #{hetero_rgcn_forward.3} parent=11 // pred_check
        %p256 = pneg %p130
      $region22: #{hetero_rgcn_forward.3} parent=11 // pred_check_branch
        %258 = sbr.rel (%p256) target = $region24
      $region23: #{hetero_rgcn_forward.3} parent=11 // pred_region
        _
      $region24: #{hetero_rgcn_forward.3} parent=11 // pred_fallthru
        _
      // Predicated region
      $region25: #{hetero_rgcn_forward.3} parent=11 // pred_check
        %p259 = pneg %p156
      $region26: #{hetero_rgcn_forward.3} parent=11 // pred_check_branch
        %261 = sbr.rel (%p259) target = $region28
      $region27: #{hetero_rgcn_forward.3} parent=11 // pred_region
        %s262 = smul.u32 16, %s23
        %p263 = scmp.lt.s32.totalorder %s262, 15
        %s264 = scalar_select %p263, %s262, 15
        %s265 = smul.addr %s264, 4
        %s266 = scalar_lea.vmem %s4, %s265
        %s267 = smul.u32 16, %s23
      $region28: #{hetero_rgcn_forward.3} parent=11 // pred_fallthru
        _
      // Predicated region
      $region29: #{hetero_rgcn_forward.3} parent=11 // pred_check
        %p268 = pneg %p177
      $region30: #{hetero_rgcn_forward.3} parent=11 // pred_check_branch
        %270 = sbr.rel (%p268) target = $region32
      $region31: #{hetero_rgcn_forward.3} parent=11 // pred_region
        _
      $region32: #{hetero_rgcn_forward.3} parent=11 // pred_fallthru
        _
      // Predicated region
      $region33: #{hetero_rgcn_forward.3} parent=11 // pred_check
        %p271 = pneg %p203
      $region34: #{hetero_rgcn_forward.3} parent=11 // pred_check_branch
        %273 = sbr.rel (%p271) target = $region36
      $region35: #{hetero_rgcn_forward.3} parent=11 // pred_region
        %s274 = smul.u32 16, %s23
        %p275 = scmp.lt.s32.totalorder %s274, 15
        %s276 = scalar_select %p275, %s274, 15
        %s277 = smul.addr %s276, 8
        %s278 = scalar_lea.vmem %s6, %s277
        %s279 = smul.u32 16, %s23
      $region36: #{hetero_rgcn_forward.3} parent=11 // pred_fallthru
        _
    $region12: #{hetero_rgcn_forward.3} parent=5 // pred_fallthru
      _
    %p280 = scmp.lt.s32.totalorder %s13, 3
    // Predicated region
    $region37: #{hetero_rgcn_forward.3} parent=5 // pred_check
      %p281 = pneg %p280
    $region38: #{hetero_rgcn_forward.3} parent=5 // pred_check_branch
      %283 = sbr.rel (%p281) target = $region40
    $region39: #{hetero_rgcn_forward.3} parent=5 // pred_region
      // Predicated region
      $region41: #{hetero_rgcn_forward.3} parent=39 // pred_check
        %p284 = pneg %p82
      $region42: #{hetero_rgcn_forward.3} parent=39 // pred_check_branch
        %286 = sbr.rel (%p284) target = $region44
      $region43: #{hetero_rgcn_forward.3} parent=39 // pred_region
        %s287 = smul.u32 16, %s20
        %p288 = scmp.lt.s32.totalorder %s22, 2
        %s289 = scalar_select %p288, %s22, 2
        %p290 = scmp.lt.s32.totalorder %s287, 15
        %s291 = scalar_select %p290, %s287, 15
        %p292 = scmp.lt.s32.totalorder %s21, 0
        %s293 = scalar_select %p292, %s21, 0
        %s294 = sadd.s32 %s293, %s291
        %s295 = smul.addr %s289, 16
        %s296 = sadd.s32 %s294, %s295
        %s297 = smul.addr %s296, 2
        %s298 = scalar_lea.vmem %s1, %s297
        %s299 = smul.u32 16, %s20
      $region44: #{hetero_rgcn_forward.3} parent=39 // pred_fallthru
        _
    $region40: #{hetero_rgcn_forward.3} parent=5 // pred_fallthru
      _
    %p300 = scmp.le.s32.totalorder 1, %s13
    %p301 = scmp.lt.s32.totalorder %s13, 4
    %p302 = pnand %p300, %p301
    %p303 = pneg %p302
    // Predicated region
    $region45: #{hetero_rgcn_forward.3} parent=5 // pred_check
      _
    $region46: #{hetero_rgcn_forward.3} parent=5 // pred_check_branch
      %305 = sbr.rel (%p302) target = $region48
    $region47: #{hetero_rgcn_forward.3} parent=5 // pred_region
      %s306 = ssub.s32 %s13, 1
      %s307 = smul.u32 16, %s24
      %p308 = scmp.lt.s32.totalorder %s307, 15
      %s309 = scalar_select %p308, %s307, 15
      %s310 = smul.addr %s309, 4
      %s311 = scalar_lea.vmem %s0, %s310
      %p312 = pneg %p58
      %p313 = pneg %p55
      %s314 = smul.u32 16, %s23
      %p315 = scmp.lt.s32.totalorder %s25, 2
      %s316 = scalar_select %p315, %s25, 2
      %p317 = scmp.lt.s32.totalorder %s314, 15
      %s318 = scalar_select %p317, %s314, 15
      %p319 = scmp.lt.s32.totalorder %s24, 0
      %s320 = scalar_select %p319, %s24, 0
      %s321 = sadd.s32 %s320, %s318
      %s322 = smul.addr %s316, 16
      %s323 = sadd.s32 %s321, %s322
      %s324 = smul.addr %s323, 2
      %s325 = scalar_lea.vmem %s1, %s324
      %p326 = pneg %p88
      %p327 = pneg %p85
      %p328 = pneg %p109
      %p329 = pneg %p106
      %p330 = pneg %p130
      %p331 = pneg %p127
      %s332 = smul.u32 16, %s23
      %p333 = scmp.lt.s32.totalorder %s332, 15
      %s334 = scalar_select %p333, %s332, 15
      %s335 = smul.addr %s334, 4
      %s336 = scalar_lea.vmem %s4, %s335
      %p337 = pneg %p156
      %p338 = pneg %p153
      %p339 = pneg %p177
      %p340 = pneg %p174
      %s341 = smul.u32 16, %s23
      %p342 = scmp.lt.s32.totalorder %s341, 15
      %s343 = scalar_select %p342, %s341, 15
      %s344 = smul.addr %s343, 8
      %s345 = scalar_lea.vmem %s6, %s344
      %p346 = pneg %p203
      %p347 = pneg %p200
      %p348 = pneg %p229
      %p349 = pneg %p226
      %s350 = smul.u32 16, %s23
      %p351 = scmp.lt.s32.totalorder %s350, 15
      %s352 = scalar_select %p351, %s350, 15
      %s353 = smul.addr %s352, 4
      %s354 = scalar_lea.vmem %s7, %s353
      %s355 = smul.u32 16, %s24
      %p356 = scmp.lt.s32.totalorder %s355, 15
      %s357 = scalar_select %p356, %s355, 15
      %s358 = smul.addr %s357, 4
      %s359 = scalar_lea.vmem %s0, %s358
      %s360 = smul.u32 16, %s24
      %s361 = smul.u32 16, %s23
      %p362 = scmp.lt.s32.totalorder %s25, 2
      %s363 = scalar_select %p362, %s25, 2
      %p364 = scmp.lt.s32.totalorder %s361, 15
      %s365 = scalar_select %p364, %s361, 15
      %p366 = scmp.lt.s32.totalorder %s24, 0
      %s367 = scalar_select %p366, %s24, 0
      %s368 = sadd.s32 %s367, %s365
      %s369 = smul.addr %s363, 16
      %s370 = sadd.s32 %s368, %s369
      %s371 = smul.addr %s370, 2
      %s372 = scalar_lea.vmem %s1, %s371
      %s373 = smul.u32 16, %s23
      %s374 = smul.u32 16, %s23
      %p375 = scmp.lt.s32.totalorder %s374, 15
      %s376 = scalar_select %p375, %s374, 15
      %s377 = smul.addr %s376, 4
      %s378 = scalar_lea.vmem %s4, %s377
      %s379 = smul.u32 16, %s23
      %s380 = smul.u32 16, %s23
      %p381 = scmp.lt.s32.totalorder %s380, 15
      %s382 = scalar_select %p381, %s380, 15
      %s383 = smul.addr %s382, 8
      %s384 = scalar_lea.vmem %s6, %s383
      %s385 = smul.u32 16, %s23
      %s386 = smul.u32 16, %s23
      %p387 = scmp.lt.s32.totalorder %s386, 15
      %s388 = scalar_select %p387, %s386, 15
      %s389 = smul.addr %s388, 4
      %s390 = scalar_lea.vmem %s7, %s389
      %s391 = smul.u32 16, %s23
      %p393 = scmp.eq.s32.totalorder %s24, 0
      %p394 = scmp.eq.s32.totalorder %s25, 0
      %p395 = pnand %p393, %p394
      %p396 = pneg %p395
      // Predicated region
      $region49: #{hetero_rgcn_forward.3} parent=47 // pred_check
        _
      $region50: #{hetero_rgcn_forward.3} parent=47 // pred_check_branch
        %398 = sbr.rel (%p395) target = $region52
      $region51: #{hetero_rgcn_forward.3} parent=47 // pred_region
        %v399 = vld [vmem:[%s378] sm:$0xf]
        %v400 = vld [vmem:[%s378 + $0x4] sm:$0xf]
        %v401 = vld [vmem:[%s378 + $0x8] sm:$0xf]
        %v402 = vld [vmem:[%s378 + $0xc] sm:$0xf]
        %v403 = vld [vmem:[%s378 + $0x10] sm:$0xf]
        %v404 = vld [vmem:[%s378 + $0x14] sm:$0xf]
        %v405 = vld [vmem:[%s378 + $0x18] sm:$0xf]
        %v406 = vld [vmem:[%s378 + $0x1c] sm:$0xf]
        %v407 = vld [vmem:[%s378 + $0x20] sm:$0xf]
        %v408 = vld [vmem:[%s378 + $0x24] sm:$0xf]
        %v409 = vld [vmem:[%s378 + $0x28] sm:$0xf]
        %v410 = vld [vmem:[%s378 + $0x2c] sm:$0xf]
        %v411 = vld [vmem:[%s378 + $0x30] sm:$0xf]
        %v412 = vld [vmem:[%s378 + $0x34] sm:$0xf]
        %v413 = vld [vmem:[%s378 + $0x38] sm:$0xf]
        %v414 = vld [vmem:[%s378 + $0x3c] sm:$0xf]
        %v415 = vld [vmem:[%s3] sm:$0xf]
        %v416 = vld [vmem:[%s3 + $0x4] sm:$0xf]
        %v417 = vld [vmem:[%s3 + $0x8] sm:$0xf]
        %v418 = vld [vmem:[%s3 + $0xc] sm:$0xf]
        %v419 = vld [vmem:[%s3 + $0x10] sm:$0xf]
        %v420 = vld [vmem:[%s3 + $0x14] sm:$0xf]
        %v421 = vld [vmem:[%s3 + $0x18] sm:$0xf]
        %v422 = vld [vmem:[%s3 + $0x1c] sm:$0xf]
        %v423 = vld [vmem:[%s3 + $0x20] sm:$0xf]
        %v424 = vld [vmem:[%s3 + $0x24] sm:$0xf]
        %v425 = vld [vmem:[%s3 + $0x28] sm:$0xf]
        %v426 = vld [vmem:[%s3 + $0x2c] sm:$0xf]
        %v427 = vld [vmem:[%s3 + $0x30] sm:$0xf]
        %v428 = vld [vmem:[%s3 + $0x34] sm:$0xf]
        %v429 = vld [vmem:[%s3 + $0x38] sm:$0xf]
        %v430 = vld [vmem:[%s3 + $0x3c] sm:$0xf]
        %v431 = vld [vmem:[%s5] sm:$0x1]
        %v433 = vlaneseq
        %v434 = vshrl.u32 %v433, 7
        %v435 = vsub.s32 0, %v434
        %v436 = vrot.slane %v431, %v435
        %v454 = vunpack.c.l.b16 %v399
        %v455 = vunpack.c.l.b16 %v400
        %v456 = vunpack.c.l.b16 %v401
        %v457 = vunpack.c.l.b16 %v402
        %v458 = vunpack.c.l.b16 %v403
        %v459 = vunpack.c.l.b16 %v404
        %v460 = vunpack.c.l.b16 %v405
        %v461 = vunpack.c.l.b16 %v406
        %v462 = vunpack.c.l.b16 %v407
        %v463 = vunpack.c.l.b16 %v408
        %v464 = vunpack.c.l.b16 %v409
        %v465 = vunpack.c.l.b16 %v410
        %v466 = vunpack.c.l.b16 %v411
        %v467 = vunpack.c.l.b16 %v412
        %v468 = vunpack.c.l.b16 %v413
        %v469 = vunpack.c.l.b16 %v414
        %v470 = vpack.c.b16 %v455, %v454
        %v471 = vpack.c.b16 %v457, %v456
        %v472 = vpack.c.b16 %v459, %v458
        %v473 = vpack.c.b16 %v461, %v460
        %v474 = vpack.c.b16 %v463, %v462
        %v475 = vpack.c.b16 %v465, %v464
        %v476 = vpack.c.b16 %v467, %v466
        %v477 = vpack.c.b16 %v469, %v468
        %v502 = vunpack.c.l.b16 %v415
        %v503 = vunpack.c.l.b16 %v416
        %v504 = vunpack.c.l.b16 %v417
        %v505 = vunpack.c.l.b16 %v418
        %v506 = vunpack.c.l.b16 %v419
        %v507 = vunpack.c.l.b16 %v420
        %v508 = vunpack.c.l.b16 %v421
        %v509 = vunpack.c.l.b16 %v422
        %v510 = vunpack.c.l.b16 %v423
        %v511 = vunpack.c.l.b16 %v424
        %v512 = vunpack.c.l.b16 %v425
        %v513 = vunpack.c.l.b16 %v426
        %v514 = vunpack.c.l.b16 %v427
        %v515 = vunpack.c.l.b16 %v428
        %v516 = vunpack.c.l.b16 %v429
        %v517 = vunpack.c.l.b16 %v430
        %v518 = vpack.c.b16 %v503, %v502
        %v519 = vpack.c.b16 %v505, %v504
        %v520 = vpack.c.b16 %v507, %v506
        %v521 = vpack.c.b16 %v509, %v508
        %v522 = vpack.c.b16 %v511, %v510
        %v523 = vpack.c.b16 %v513, %v512
        %v524 = vpack.c.b16 %v515, %v514
        %v525 = vpack.c.b16 %v517, %v516
        %534 = vmatprep.subr.bf16.mxu0 0
        %535 = vmatpush1.bf16.msra.mxu0 %v525
        %536 = vmatprep.subr.bf16.mxu0 0
        %537 = vmatpush1.bf16.msra.mxu0 %v524
        %538 = vmatprep.subr.bf16.mxu0 0
        %539 = vmatpush1.bf16.msra.mxu0 %v523
        %540 = vmatprep.subr.bf16.mxu0 0
        %541 = vmatpush1.bf16.msra.mxu0 %v522
        %542 = vmatprep.subr.bf16.mxu0 0
        %543 = vmatpush1.bf16.msra.mxu0 %v521
        %544 = vmatprep.subr.bf16.mxu0 0
        %545 = vmatpush1.bf16.msra.mxu0 %v520
        %546 = vmatprep.subr.bf16.mxu0 0
        %547 = vmatpush1.bf16.msra.mxu0 %v519
        %548 = vmatprep.subr.bf16.mxu0 0
        %549 = vmatpush1.bf16.msra.mxu0 %v518
        %550 = vmatprep.subr.bf16.mxu0 0
        %551 = vmatpush2.bf16.msra.mxu0 0
        %552 = vmatprep.subr.bf16.mxu0 0
        %553 = vmatpush2.bf16.msra.mxu0 0
        %554 = vmatprep.subr.bf16.mxu0 0
        %555 = vmatpush2.bf16.msra.mxu0 0
        %556 = vmatprep.subr.bf16.mxu0 0
        %557 = vmatpush2.bf16.msra.mxu0 0
        %558 = vmatprep.subr.bf16.mxu0 0
        %559 = vmatpush2.bf16.msra.mxu0 0
        %560 = vmatprep.subr.bf16.mxu0 0
        %561 = vmatpush2.bf16.msra.mxu0 0
        %562 = vmatprep.subr.bf16.mxu0 0
        %563 = vmatpush2.bf16.msra.mxu0 0
        %564 = vmatprep.subr.bf16.mxu0 0
        %565 = vmatpush2.bf16.msra.mxu0 0
        %566 = vmatprep.mubr.bf16.mxu0 0
        %567 = vmatmul.mubr.bf16.gmra.mxu0 %v470
        %v568 = vpop.f32.mrf.mxu0
        %v569 = vadd.f32 %v436, %v568
        %v570 = vpop.f32.mrf.mxu0
        %v571 = vpop.f32.mrf.mxu0
        %v572 = vadd.f32 %v436, %v571
        %v573 = vpop.f32.mrf.mxu0
        %574 = vmatprep.mubr.bf16.mxu0 0
        %575 = vmatmul.mubr.bf16.gmra.mxu0 %v471
        %v576 = vpop.f32.mrf.mxu0
        %v577 = vadd.f32 %v436, %v576
        %v578 = vpop.f32.mrf.mxu0
        %v579 = vpop.f32.mrf.mxu0
        %v580 = vadd.f32 %v436, %v579
        %v581 = vpop.f32.mrf.mxu0
        %582 = vmatprep.mubr.bf16.mxu0 0
        %583 = vmatmul.mubr.bf16.gmra.mxu0 %v472
        %v584 = vpop.f32.mrf.mxu0
        %v585 = vadd.f32 %v436, %v584
        %v586 = vpop.f32.mrf.mxu0
        %v587 = vpop.f32.mrf.mxu0
        %v588 = vadd.f32 %v436, %v587
        %v589 = vpop.f32.mrf.mxu0
        %590 = vmatprep.mubr.bf16.mxu0 0
        %591 = vmatmul.mubr.bf16.gmra.mxu0 %v473
        %v592 = vpop.f32.mrf.mxu0
        %v593 = vadd.f32 %v436, %v592
        %v594 = vpop.f32.mrf.mxu0
        %v595 = vpop.f32.mrf.mxu0
        %v596 = vadd.f32 %v436, %v595
        %v597 = vpop.f32.mrf.mxu0
        %598 = vmatprep.mubr.bf16.mxu0 0
        %599 = vmatmul.mubr.bf16.gmra.mxu0 %v474
        %v600 = vpop.f32.mrf.mxu0
        %v601 = vadd.f32 %v436, %v600
        %v602 = vpop.f32.mrf.mxu0
        %v603 = vpop.f32.mrf.mxu0
        %v604 = vadd.f32 %v436, %v603
        %v605 = vpop.f32.mrf.mxu0
        %606 = vmatprep.mubr.bf16.mxu0 0
        %607 = vmatmul.mubr.bf16.gmra.mxu0 %v475
        %v608 = vpop.f32.mrf.mxu0
        %v609 = vadd.f32 %v436, %v608
        %v610 = vpop.f32.mrf.mxu0
        %v611 = vpop.f32.mrf.mxu0
        %v612 = vadd.f32 %v436, %v611
        %v613 = vpop.f32.mrf.mxu0
        %614 = vmatprep.mubr.bf16.mxu0 0
        %615 = vmatmul.mubr.bf16.gmra.mxu0 %v476
        %v616 = vpop.f32.mrf.mxu0
        %v617 = vadd.f32 %v436, %v616
        %v618 = vpop.f32.mrf.mxu0
        %v619 = vpop.f32.mrf.mxu0
        %v620 = vadd.f32 %v436, %v619
        %v621 = vpop.f32.mrf.mxu0
        %622 = vmatprep.mubr.bf16.mxu0 0
        %623 = vmatmul.mubr.bf16.gmra.mxu0 %v477
        %v624 = vpop.f32.mrf.mxu0
        %v625 = vadd.f32 %v436, %v624
        %v626 = vpop.f32.mrf.mxu0
        %v627 = vpop.f32.mrf.mxu0
        %v628 = vadd.f32 %v436, %v627
        %v629 = vpop.f32.mrf.mxu0
        %630 = vdwg.mxu0
        %631 = vst [vmem:[#allocation2] sm:$0xff] %v569
        %632 = vst [vmem:[#allocation2 + $0x8] sm:$0xff] %v572
        %633 = vst [vmem:[#allocation2 + $0x10] sm:$0xff] %v577
        %634 = vst [vmem:[#allocation2 + $0x18] sm:$0xff] %v580
        %635 = vst [vmem:[#allocation2 + $0x20] sm:$0xff] %v585
        %636 = vst [vmem:[#allocation2 + $0x28] sm:$0xff] %v588
        %637 = vst [vmem:[#allocation2 + $0x30] sm:$0xff] %v593
        %638 = vst [vmem:[#allocation2 + $0x38] sm:$0xff] %v596
        %639 = vst [vmem:[#allocation2 + $0x40] sm:$0xff] %v601
        %640 = vst [vmem:[#allocation2 + $0x48] sm:$0xff] %v604
        %641 = vst [vmem:[#allocation2 + $0x50] sm:$0xff] %v609
        %642 = vst [vmem:[#allocation2 + $0x58] sm:$0xff] %v612
        %643 = vst [vmem:[#allocation2 + $0x60] sm:$0xff] %v617
        %644 = vst [vmem:[#allocation2 + $0x68] sm:$0xff] %v620
        %645 = vst [vmem:[#allocation2 + $0x70] sm:$0xff] %v625
        %646 = vst [vmem:[#allocation2 + $0x78] sm:$0xff] %v628
        %647 = vst [vmem:[#allocation3] sm:$0xff] 0.0
        %648 = vst [vmem:[#allocation3 + $0x8] sm:$0xff] 0.0
        %649 = vst [vmem:[#allocation3 + $0x10] sm:$0xff] 0.0
        %650 = vst [vmem:[#allocation3 + $0x18] sm:$0xff] 0.0
        %651 = vst [vmem:[#allocation3 + $0x20] sm:$0xff] 0.0
        %652 = vst [vmem:[#allocation3 + $0x28] sm:$0xff] 0.0
        %653 = vst [vmem:[#allocation3 + $0x30] sm:$0xff] 0.0
        %654 = vst [vmem:[#allocation3 + $0x38] sm:$0xff] 0.0
        %655 = vst [vmem:[#allocation3 + $0x40] sm:$0xff] 0.0
        %656 = vst [vmem:[#allocation3 + $0x48] sm:$0xff] 0.0
        %657 = vst [vmem:[#allocation3 + $0x50] sm:$0xff] 0.0
        %658 = vst [vmem:[#allocation3 + $0x58] sm:$0xff] 0.0
        %659 = vst [vmem:[#allocation3 + $0x60] sm:$0xff] 0.0
        %660 = vst [vmem:[#allocation3 + $0x68] sm:$0xff] 0.0
        %661 = vst [vmem:[#allocation3 + $0x70] sm:$0xff] 0.0
        %662 = vst [vmem:[#allocation3 + $0x78] sm:$0xff] 0.0
        %663 = vst [vmem:[#allocation3 + $0x80] sm:$0xff] 0.0
        %664 = vst [vmem:[#allocation3 + $0x88] sm:$0xff] 0.0
        %665 = vst [vmem:[#allocation3 + $0x90] sm:$0xff] 0.0
        %666 = vst [vmem:[#allocation3 + $0x98] sm:$0xff] 0.0
        %667 = vst [vmem:[#allocation3 + $0xa0] sm:$0xff] 0.0
        %668 = vst [vmem:[#allocation3 + $0xa8] sm:$0xff] 0.0
        %669 = vst [vmem:[#allocation3 + $0xb0] sm:$0xff] 0.0
        %670 = vst [vmem:[#allocation3 + $0xb8] sm:$0xff] 0.0
        %671 = vst [vmem:[#allocation3 + $0xc0] sm:$0xff] 0.0
        %672 = vst [vmem:[#allocation3 + $0xc8] sm:$0xff] 0.0
        %673 = vst [vmem:[#allocation3 + $0xd0] sm:$0xff] 0.0
        %674 = vst [vmem:[#allocation3 + $0xd8] sm:$0xff] 0.0
        %675 = vst [vmem:[#allocation3 + $0xe0] sm:$0xff] 0.0
        %676 = vst [vmem:[#allocation3 + $0xe8] sm:$0xff] 0.0
        %677 = vst [vmem:[#allocation3 + $0xf0] sm:$0xff] 0.0
        %678 = vst [vmem:[#allocation3 + $0xf8] sm:$0xff] 0.0
        %679 = vst [vmem:[#allocation3 + $0x100] sm:$0xff] 0.0
        %680 = vst [vmem:[#allocation3 + $0x108] sm:$0xff] 0.0
        %681 = vst [vmem:[#allocation3 + $0x110] sm:$0xff] 0.0
        %682 = vst [vmem:[#allocation3 + $0x118] sm:$0xff] 0.0
        %683 = vst [vmem:[#allocation3 + $0x120] sm:$0xff] 0.0
        %684 = vst [vmem:[#allocation3 + $0x128] sm:$0xff] 0.0
        %685 = vst [vmem:[#allocation3 + $0x130] sm:$0xff] 0.0
        %686 = vst [vmem:[#allocation3 + $0x138] sm:$0xff] 0.0
        %687 = vst [vmem:[#allocation3 + $0x140] sm:$0xff] 0.0
        %688 = vst [vmem:[#allocation3 + $0x148] sm:$0xff] 0.0
        %689 = vst [vmem:[#allocation3 + $0x150] sm:$0xff] 0.0
        %690 = vst [vmem:[#allocation3 + $0x158] sm:$0xff] 0.0
        %691 = vst [vmem:[#allocation3 + $0x160] sm:$0xff] 0.0
        %692 = vst [vmem:[#allocation3 + $0x168] sm:$0xff] 0.0
        %693 = vst [vmem:[#allocation3 + $0x170] sm:$0xff] 0.0
        %694 = vst [vmem:[#allocation3 + $0x178] sm:$0xff] 0.0
      $region52: #{hetero_rgcn_forward.3} parent=47 // pred_fallthru
        _
      %v695 = vld [vmem:[%s372] sm:$0x3]
      %v696 = vld [vmem:[%s372 + $0x2] sm:$0x3]
      %v697 = vld [vmem:[%s372 + $0x4] sm:$0x3]
      %v698 = vld [vmem:[%s372 + $0x6] sm:$0x3]
      %v699 = vld [vmem:[%s372 + $0x8] sm:$0x3]
      %v700 = vld [vmem:[%s372 + $0xa] sm:$0x3]
      %v701 = vld [vmem:[%s372 + $0xc] sm:$0x3]
      %v702 = vld [vmem:[%s372 + $0xe] sm:$0x3]
      %v703 = vld [vmem:[%s372 + $0x10] sm:$0x3]
      %v704 = vld [vmem:[%s372 + $0x12] sm:$0x3]
      %v705 = vld [vmem:[%s372 + $0x14] sm:$0x3]
      %v706 = vld [vmem:[%s372 + $0x16] sm:$0x3]
      %v707 = vld [vmem:[%s372 + $0x18] sm:$0x3]
      %v708 = vld [vmem:[%s372 + $0x1a] sm:$0x3]
      %v709 = vld [vmem:[%s372 + $0x1c] sm:$0x3]
      %v710 = vld [vmem:[%s372 + $0x1e] sm:$0x3]
      %v711 = vunpack.c.l.s8.bf16 %v695
      %v712 = vunpack.c.l.s8.bf16 %v696
      %v713 = vunpack.c.l.s8.bf16 %v697
      %v714 = vunpack.c.l.s8.bf16 %v698
      %v715 = vunpack.c.l.s8.bf16 %v699
      %v716 = vunpack.c.l.s8.bf16 %v700
      %v717 = vunpack.c.l.s8.bf16 %v701
      %v718 = vunpack.c.l.s8.bf16 %v702
      %v719 = vunpack.c.l.s8.bf16 %v703
      %v720 = vunpack.c.l.s8.bf16 %v704
      %v721 = vunpack.c.l.s8.bf16 %v705
      %v722 = vunpack.c.l.s8.bf16 %v706
      %v723 = vunpack.c.l.s8.bf16 %v707
      %v724 = vunpack.c.l.s8.bf16 %v708
      %v725 = vunpack.c.l.s8.bf16 %v709
      %v726 = vunpack.c.l.s8.bf16 %v710
      %s727 = smul.u32 %s25, 128
      %s728 = scalar_lea.vmem [#allocation3], %s727
      %v729 = vld [vmem:[%s728] sm:$0xff]
      %v730 = vld [vmem:[%s728 + $0x8] sm:$0xff]
      %v731 = vld [vmem:[%s728 + $0x10] sm:$0xff]
      %v732 = vld [vmem:[%s728 + $0x18] sm:$0xff]
      %v733 = vld [vmem:[%s728 + $0x20] sm:$0xff]
      %v734 = vld [vmem:[%s728 + $0x28] sm:$0xff]
      %v735 = vld [vmem:[%s728 + $0x30] sm:$0xff]
      %v736 = vld [vmem:[%s728 + $0x38] sm:$0xff]
      %v737 = vld [vmem:[%s728 + $0x40] sm:$0xff]
      %v738 = vld [vmem:[%s728 + $0x48] sm:$0xff]
      %v739 = vld [vmem:[%s728 + $0x50] sm:$0xff]
      %v740 = vld [vmem:[%s728 + $0x58] sm:$0xff]
      %v741 = vld [vmem:[%s728 + $0x60] sm:$0xff]
      %v742 = vld [vmem:[%s728 + $0x68] sm:$0xff]
      %v743 = vld [vmem:[%s728 + $0x70] sm:$0xff]
      %v744 = vld [vmem:[%s728 + $0x78] sm:$0xff]
      %v745 = vld [vmem:[%s359] sm:$0xf]
      %v746 = vld [vmem:[%s359 + $0x4] sm:$0xf]
      %v747 = vld [vmem:[%s359 + $0x8] sm:$0xf]
      %v748 = vld [vmem:[%s359 + $0xc] sm:$0xf]
      %v749 = vld [vmem:[%s359 + $0x10] sm:$0xf]
      %v750 = vld [vmem:[%s359 + $0x14] sm:$0xf]
      %v751 = vld [vmem:[%s359 + $0x18] sm:$0xf]
      %v752 = vld [vmem:[%s359 + $0x1c] sm:$0xf]
      %v753 = vld [vmem:[%s359 + $0x20] sm:$0xf]
      %v754 = vld [vmem:[%s359 + $0x24] sm:$0xf]
      %v755 = vld [vmem:[%s359 + $0x28] sm:$0xf]
      %v756 = vld [vmem:[%s359 + $0x2c] sm:$0xf]
      %v757 = vld [vmem:[%s359 + $0x30] sm:$0xf]
      %v758 = vld [vmem:[%s359 + $0x34] sm:$0xf]
      %v759 = vld [vmem:[%s359 + $0x38] sm:$0xf]
      %v760 = vld [vmem:[%s359 + $0x3c] sm:$0xf]
      %v777 = vunpack.c.l.b16 %v711
      %v778 = vunpack.c.l.b16 %v712
      %v779 = vunpack.c.l.b16 %v713
      %v780 = vunpack.c.l.b16 %v714
      %v781 = vunpack.c.l.b16 %v715
      %v782 = vunpack.c.l.b16 %v716
      %v783 = vunpack.c.l.b16 %v717
      %v784 = vunpack.c.l.b16 %v718
      %v785 = vunpack.c.l.b16 %v719
      %v786 = vunpack.c.l.b16 %v720
      %v787 = vunpack.c.l.b16 %v721
      %v788 = vunpack.c.l.b16 %v722
      %v789 = vunpack.c.l.b16 %v723
      %v790 = vunpack.c.l.b16 %v724
      %v791 = vunpack.c.l.b16 %v725
      %v792 = vunpack.c.l.b16 %v726
      %v793 = vpack.c.b16 %v778, %v777
      %v794 = vpack.c.b16 %v780, %v779
      %v795 = vpack.c.b16 %v782, %v781
      %v796 = vpack.c.b16 %v784, %v783
      %v797 = vpack.c.b16 %v786, %v785
      %v798 = vpack.c.b16 %v788, %v787
      %v799 = vpack.c.b16 %v790, %v789
      %v800 = vpack.c.b16 %v792, %v791
      %v825 = vunpack.c.l.b16 %v745
      %v826 = vunpack.c.l.b16 %v746
      %v827 = vunpack.c.l.b16 %v747
      %v828 = vunpack.c.l.b16 %v748
      %v829 = vunpack.c.l.b16 %v749
      %v830 = vunpack.c.l.b16 %v750
      %v831 = vunpack.c.l.b16 %v751
      %v832 = vunpack.c.l.b16 %v752
      %v833 = vunpack.c.l.b16 %v753
      %v834 = vunpack.c.l.b16 %v754
      %v835 = vunpack.c.l.b16 %v755
      %v836 = vunpack.c.l.b16 %v756
      %v837 = vunpack.c.l.b16 %v757
      %v838 = vunpack.c.l.b16 %v758
      %v839 = vunpack.c.l.b16 %v759
      %v840 = vunpack.c.l.b16 %v760
      %v841 = vpack.c.b16 %v826, %v825
      %v842 = vpack.c.b16 %v828, %v827
      %v843 = vpack.c.b16 %v830, %v829
      %v844 = vpack.c.b16 %v832, %v831
      %v845 = vpack.c.b16 %v834, %v833
      %v846 = vpack.c.b16 %v836, %v835
      %v847 = vpack.c.b16 %v838, %v837
      %v848 = vpack.c.b16 %v840, %v839
      %857 = vmatprep.subr.bf16.mxu0 0
      %858 = vmatpush1.bf16.msra.mxu0 %v848
      %859 = vmatprep.subr.bf16.mxu0 0
      %860 = vmatpush1.bf16.msra.mxu0 %v847
      %861 = vmatprep.subr.bf16.mxu0 0
      %862 = vmatpush1.bf16.msra.mxu0 %v846
      %863 = vmatprep.subr.bf16.mxu0 0
      %864 = vmatpush1.bf16.msra.mxu0 %v845
      %865 = vmatprep.subr.bf16.mxu0 0
      %866 = vmatpush1.bf16.msra.mxu0 %v844
      %867 = vmatprep.subr.bf16.mxu0 0
      %868 = vmatpush1.bf16.msra.mxu0 %v843
      %869 = vmatprep.subr.bf16.mxu0 0
      %870 = vmatpush1.bf16.msra.mxu0 %v842
      %871 = vmatprep.subr.bf16.mxu0 0
      %872 = vmatpush1.bf16.msra.mxu0 %v841
      %873 = vmatprep.subr.bf16.mxu0 0
      %874 = vmatpush2.bf16.msra.mxu0 0
      %875 = vmatprep.subr.bf16.mxu0 0
      %876 = vmatpush2.bf16.msra.mxu0 0
      %877 = vmatprep.subr.bf16.mxu0 0
      %878 = vmatpush2.bf16.msra.mxu0 0
      %879 = vmatprep.subr.bf16.mxu0 0
      %880 = vmatpush2.bf16.msra.mxu0 0
      %881 = vmatprep.subr.bf16.mxu0 0
      %882 = vmatpush2.bf16.msra.mxu0 0
      %883 = vmatprep.subr.bf16.mxu0 0
      %884 = vmatpush2.bf16.msra.mxu0 0
      %885 = vmatprep.subr.bf16.mxu0 0
      %886 = vmatpush2.bf16.msra.mxu0 0
      %887 = vmatprep.subr.bf16.mxu0 0
      %888 = vmatpush2.bf16.msra.mxu0 0
      %889 = vmatprep.mubr.bf16.mxu0 0
      %890 = vmatmul.mubr.bf16.gmra.mxu0 %v793
      %v891 = vpop.f32.mrf.mxu0
      %v892 = vadd.f32 0.0, %v891
      %v893 = vpop.f32.mrf.mxu0
      %v894 = vpop.f32.mrf.mxu0
      %v895 = vadd.f32 0.0, %v894
      %v896 = vpop.f32.mrf.mxu0
      %897 = vmatprep.mubr.bf16.mxu0 0
      %898 = vmatmul.mubr.bf16.gmra.mxu0 %v794
      %v899 = vpop.f32.mrf.mxu0
      %v900 = vadd.f32 0.0, %v899
      %v901 = vpop.f32.mrf.mxu0
      %v902 = vpop.f32.mrf.mxu0
      %v903 = vadd.f32 0.0, %v902
      %v904 = vpop.f32.mrf.mxu0
      %905 = vmatprep.mubr.bf16.mxu0 0
      %906 = vmatmul.mubr.bf16.gmra.mxu0 %v795
      %v907 = vpop.f32.mrf.mxu0
      %v908 = vadd.f32 0.0, %v907
      %v909 = vpop.f32.mrf.mxu0
      %v910 = vpop.f32.mrf.mxu0
      %v911 = vadd.f32 0.0, %v910
      %v912 = vpop.f32.mrf.mxu0
      %913 = vmatprep.mubr.bf16.mxu0 0
      %914 = vmatmul.mubr.bf16.gmra.mxu0 %v796
      %v915 = vpop.f32.mrf.mxu0
      %v916 = vadd.f32 0.0, %v915
      %v917 = vpop.f32.mrf.mxu0
      %v918 = vpop.f32.mrf.mxu0
      %v919 = vadd.f32 0.0, %v918
      %v920 = vpop.f32.mrf.mxu0
      %921 = vmatprep.mubr.bf16.mxu0 0
      %922 = vmatmul.mubr.bf16.gmra.mxu0 %v797
      %v923 = vpop.f32.mrf.mxu0
      %v924 = vadd.f32 0.0, %v923
      %v925 = vpop.f32.mrf.mxu0
      %v926 = vpop.f32.mrf.mxu0
      %v927 = vadd.f32 0.0, %v926
      %v928 = vpop.f32.mrf.mxu0
      %929 = vmatprep.mubr.bf16.mxu0 0
      %930 = vmatmul.mubr.bf16.gmra.mxu0 %v798
      %v931 = vpop.f32.mrf.mxu0
      %v932 = vadd.f32 0.0, %v931
      %v933 = vpop.f32.mrf.mxu0
      %v934 = vpop.f32.mrf.mxu0
      %v935 = vadd.f32 0.0, %v934
      %v936 = vpop.f32.mrf.mxu0
      %937 = vmatprep.mubr.bf16.mxu0 0
      %938 = vmatmul.mubr.bf16.gmra.mxu0 %v799
      %v939 = vpop.f32.mrf.mxu0
      %v940 = vadd.f32 0.0, %v939
      %v941 = vpop.f32.mrf.mxu0
      %v942 = vpop.f32.mrf.mxu0
      %v943 = vadd.f32 0.0, %v942
      %v944 = vpop.f32.mrf.mxu0
      %945 = vmatprep.mubr.bf16.mxu0 0
      %946 = vmatmul.mubr.bf16.gmra.mxu0 %v800
      %v947 = vpop.f32.mrf.mxu0
      %v948 = vadd.f32 0.0, %v947
      %v949 = vpop.f32.mrf.mxu0
      %v950 = vpop.f32.mrf.mxu0
      %v951 = vadd.f32 0.0, %v950
      %v952 = vpop.f32.mrf.mxu0
      %953 = vdwg.mxu0
      %v954 = vadd.f32 %v729, %v892
      %v955 = vadd.f32 %v730, %v895
      %v956 = vadd.f32 %v731, %v900
      %v957 = vadd.f32 %v732, %v903
      %v958 = vadd.f32 %v733, %v908
      %v959 = vadd.f32 %v734, %v911
      %v960 = vadd.f32 %v735, %v916
      %v961 = vadd.f32 %v736, %v919
      %v962 = vadd.f32 %v737, %v924
      %v963 = vadd.f32 %v738, %v927
      %v964 = vadd.f32 %v739, %v932
      %v965 = vadd.f32 %v740, %v935
      %v966 = vadd.f32 %v741, %v940
      %v967 = vadd.f32 %v742, %v943
      %v968 = vadd.f32 %v743, %v948
      %v969 = vadd.f32 %v744, %v951
      %970 = vst [vmem:[%s728] sm:$0xff] %v954
      %971 = vst [vmem:[%s728 + $0x8] sm:$0xff] %v955
      %972 = vst [vmem:[%s728 + $0x10] sm:$0xff] %v956
      %973 = vst [vmem:[%s728 + $0x18] sm:$0xff] %v957
      %974 = vst [vmem:[%s728 + $0x20] sm:$0xff] %v958
      %975 = vst [vmem:[%s728 + $0x28] sm:$0xff] %v959
      %976 = vst [vmem:[%s728 + $0x30] sm:$0xff] %v960
      %977 = vst [vmem:[%s728 + $0x38] sm:$0xff] %v961
      %978 = vst [vmem:[%s728 + $0x40] sm:$0xff] %v962
      %979 = vst [vmem:[%s728 + $0x48] sm:$0xff] %v963
      %980 = vst [vmem:[%s728 + $0x50] sm:$0xff] %v964
      %981 = vst [vmem:[%s728 + $0x58] sm:$0xff] %v965
      %982 = vst [vmem:[%s728 + $0x60] sm:$0xff] %v966
      %983 = vst [vmem:[%s728 + $0x68] sm:$0xff] %v967
      %984 = vst [vmem:[%s728 + $0x70] sm:$0xff] %v968
      %985 = vst [vmem:[%s728 + $0x78] sm:$0xff] %v969
      // Predicated region
      $region53: #{hetero_rgcn_forward.3} parent=47 // pred_check
        %p986 = pneg %p393
      $region54: #{hetero_rgcn_forward.3} parent=47 // pred_check_branch
        %988 = sbr.rel (%p986) target = $region56
      $region55: #{hetero_rgcn_forward.3} parent=47 // pred_region
        %v989 = vld [vmem:[%s728] sm:$0xff]
        %v990 = vld [vmem:[%s728 + $0x8] sm:$0xff]
        %v991 = vld [vmem:[%s728 + $0x10] sm:$0xff]
        %v992 = vld [vmem:[%s728 + $0x18] sm:$0xff]
        %v993 = vld [vmem:[%s728 + $0x20] sm:$0xff]
        %v994 = vld [vmem:[%s728 + $0x28] sm:$0xff]
        %v995 = vld [vmem:[%s728 + $0x30] sm:$0xff]
        %v996 = vld [vmem:[%s728 + $0x38] sm:$0xff]
        %v997 = vld [vmem:[%s728 + $0x40] sm:$0xff]
        %v998 = vld [vmem:[%s728 + $0x48] sm:$0xff]
        %v999 = vld [vmem:[%s728 + $0x50] sm:$0xff]
        %v1000 = vld [vmem:[%s728 + $0x58] sm:$0xff]
        %v1001 = vld [vmem:[%s728 + $0x60] sm:$0xff]
        %v1002 = vld [vmem:[%s728 + $0x68] sm:$0xff]
        %v1003 = vld [vmem:[%s728 + $0x70] sm:$0xff]
        %v1004 = vld [vmem:[%s728 + $0x78] sm:$0xff]
        %s1005 = scalar_lea.vmem %s384, %s727
        %v1006 = vld [vmem:[%s1005] sm:$0xff]
        %v1007 = vld [vmem:[%s1005 + $0x8] sm:$0xff]
        %v1008 = vld [vmem:[%s1005 + $0x10] sm:$0xff]
        %v1009 = vld [vmem:[%s1005 + $0x18] sm:$0xff]
        %v1010 = vld [vmem:[%s1005 + $0x20] sm:$0xff]
        %v1011 = vld [vmem:[%s1005 + $0x28] sm:$0xff]
        %v1012 = vld [vmem:[%s1005 + $0x30] sm:$0xff]
        %v1013 = vld [vmem:[%s1005 + $0x38] sm:$0xff]
        %v1014 = vld [vmem:[%s1005 + $0x40] sm:$0xff]
        %v1015 = vld [vmem:[%s1005 + $0x48] sm:$0xff]
        %v1016 = vld [vmem:[%s1005 + $0x50] sm:$0xff]
        %v1017 = vld [vmem:[%s1005 + $0x58] sm:$0xff]
        %v1018 = vld [vmem:[%s1005 + $0x60] sm:$0xff]
        %v1019 = vld [vmem:[%s1005 + $0x68] sm:$0xff]
        %v1020 = vld [vmem:[%s1005 + $0x70] sm:$0xff]
        %v1021 = vld [vmem:[%s1005 + $0x78] sm:$0xff]
        %1023 = vset.pattern.permute.xlu0 0
        %1024 = vperm.xlu0 %1023, %v1006
        %v1025 = vpop.permute.xlu0 %1024
        %1028 = vset.pattern.permute.xlu0 0
        %1029 = vperm.xlu0 %1028, %v1007
        %v1030 = vpop.permute.xlu0 %1029
        %1033 = vset.pattern.permute.xlu0 0
        %1034 = vperm.xlu0 %1033, %v1008
        %v1035 = vpop.permute.xlu0 %1034
        %1038 = vset.pattern.permute.xlu0 0
        %1039 = vperm.xlu0 %1038, %v1009
        %v1040 = vpop.permute.xlu0 %1039
        %1043 = vset.pattern.permute.xlu0 0
        %1044 = vperm.xlu0 %1043, %v1010
        %v1045 = vpop.permute.xlu0 %1044
        %1048 = vset.pattern.permute.xlu0 0
        %1049 = vperm.xlu0 %1048, %v1011
        %v1050 = vpop.permute.xlu0 %1049
        %1053 = vset.pattern.permute.xlu0 0
        %1054 = vperm.xlu0 %1053, %v1012
        %v1055 = vpop.permute.xlu0 %1054
        %1058 = vset.pattern.permute.xlu0 0
        %1059 = vperm.xlu0 %1058, %v1013
        %v1060 = vpop.permute.xlu0 %1059
        %1063 = vset.pattern.permute.xlu0 0
        %1064 = vperm.xlu0 %1063, %v1014
        %v1065 = vpop.permute.xlu0 %1064
        %1068 = vset.pattern.permute.xlu0 0
        %1069 = vperm.xlu0 %1068, %v1015
        %v1070 = vpop.permute.xlu0 %1069
        %1073 = vset.pattern.permute.xlu0 0
        %1074 = vperm.xlu0 %1073, %v1016
        %v1075 = vpop.permute.xlu0 %1074
        %1078 = vset.pattern.permute.xlu0 0
        %1079 = vperm.xlu0 %1078, %v1017
        %v1080 = vpop.permute.xlu0 %1079
        %1083 = vset.pattern.permute.xlu0 0
        %1084 = vperm.xlu0 %1083, %v1018
        %v1085 = vpop.permute.xlu0 %1084
        %1088 = vset.pattern.permute.xlu0 0
        %1089 = vperm.xlu0 %1088, %v1019
        %v1090 = vpop.permute.xlu0 %1089
        %1093 = vset.pattern.permute.xlu0 0
        %1094 = vperm.xlu0 %1093, %v1020
        %v1095 = vpop.permute.xlu0 %1094
        %1098 = vset.pattern.permute.xlu0 0
        %1099 = vperm.xlu0 %1098, %v1021
        %v1100 = vpop.permute.xlu0 %1099
        %v1102 = vmul.f32 %v989, %v1025
        %v1103 = vmul.f32 %v990, %v1030
        %v1104 = vmul.f32 %v991, %v1035
        %v1105 = vmul.f32 %v992, %v1040
        %v1106 = vmul.f32 %v993, %v1045
        %v1107 = vmul.f32 %v994, %v1050
        %v1108 = vmul.f32 %v995, %v1055
        %v1109 = vmul.f32 %v996, %v1060
        %v1110 = vmul.f32 %v997, %v1065
        %v1111 = vmul.f32 %v998, %v1070
        %v1112 = vmul.f32 %v999, %v1075
        %v1113 = vmul.f32 %v1000, %v1080
        %v1114 = vmul.f32 %v1001, %v1085
        %v1115 = vmul.f32 %v1002, %v1090
        %v1116 = vmul.f32 %v1003, %v1095
        %v1117 = vmul.f32 %v1004, %v1100
        %v1118 = vpack.c.bf16 %v1103, %v1102
        %v1119 = vpack.c.bf16 %v1105, %v1104
        %v1120 = vpack.c.bf16 %v1107, %v1106
        %v1121 = vpack.c.bf16 %v1109, %v1108
        %v1122 = vpack.c.bf16 %v1111, %v1110
        %v1123 = vpack.c.bf16 %v1113, %v1112
        %v1124 = vpack.c.bf16 %v1115, %v1114
        %v1125 = vpack.c.bf16 %v1117, %v1116
        %v1126 = vld [vmem:[#allocation2] sm:$0xff]
        %v1127 = vld [vmem:[#allocation2 + $0x8] sm:$0xff]
        %v1128 = vld [vmem:[#allocation2 + $0x10] sm:$0xff]
        %v1129 = vld [vmem:[#allocation2 + $0x18] sm:$0xff]
        %v1130 = vld [vmem:[#allocation2 + $0x20] sm:$0xff]
        %v1131 = vld [vmem:[#allocation2 + $0x28] sm:$0xff]
        %v1132 = vld [vmem:[#allocation2 + $0x30] sm:$0xff]
        %v1133 = vld [vmem:[#allocation2 + $0x38] sm:$0xff]
        %v1134 = vld [vmem:[#allocation2 + $0x40] sm:$0xff]
        %v1135 = vld [vmem:[#allocation2 + $0x48] sm:$0xff]
        %v1136 = vld [vmem:[#allocation2 + $0x50] sm:$0xff]
        %v1137 = vld [vmem:[#allocation2 + $0x58] sm:$0xff]
        %v1138 = vld [vmem:[#allocation2 + $0x60] sm:$0xff]
        %v1139 = vld [vmem:[#allocation2 + $0x68] sm:$0xff]
        %v1140 = vld [vmem:[#allocation2 + $0x70] sm:$0xff]
        %v1141 = vld [vmem:[#allocation2 + $0x78] sm:$0xff]
        %s1142 = smul.u32 %s25, 16
        %s1143 = smul.addr %s1142, 4
        %s1144 = scalar_lea.vmem %s2, %s1143
        %v1145 = vld [vmem:[%s1144] sm:$0xf]
        %v1146 = vld [vmem:[%s1144 + $0x4] sm:$0xf]
        %v1147 = vld [vmem:[%s1144 + $0x8] sm:$0xf]
        %v1148 = vld [vmem:[%s1144 + $0xc] sm:$0xf]
        %v1149 = vld [vmem:[%s1144 + $0x10] sm:$0xf]
        %v1150 = vld [vmem:[%s1144 + $0x14] sm:$0xf]
        %v1151 = vld [vmem:[%s1144 + $0x18] sm:$0xf]
        %v1152 = vld [vmem:[%s1144 + $0x1c] sm:$0xf]
        %v1153 = vld [vmem:[%s1144 + $0x20] sm:$0xf]
        %v1154 = vld [vmem:[%s1144 + $0x24] sm:$0xf]
        %v1155 = vld [vmem:[%s1144 + $0x28] sm:$0xf]
        %v1156 = vld [vmem:[%s1144 + $0x2c] sm:$0xf]
        %v1157 = vld [vmem:[%s1144 + $0x30] sm:$0xf]
        %v1158 = vld [vmem:[%s1144 + $0x34] sm:$0xf]
        %v1159 = vld [vmem:[%s1144 + $0x38] sm:$0xf]
        %v1160 = vld [vmem:[%s1144 + $0x3c] sm:$0xf]
        %v1177 = vunpack.c.l.b16 %v1145
        %v1178 = vunpack.c.l.b16 %v1146
        %v1179 = vunpack.c.l.b16 %v1147
        %v1180 = vunpack.c.l.b16 %v1148
        %v1181 = vunpack.c.l.b16 %v1149
        %v1182 = vunpack.c.l.b16 %v1150
        %v1183 = vunpack.c.l.b16 %v1151
        %v1184 = vunpack.c.l.b16 %v1152
        %v1185 = vunpack.c.l.b16 %v1153
        %v1186 = vunpack.c.l.b16 %v1154
        %v1187 = vunpack.c.l.b16 %v1155
        %v1188 = vunpack.c.l.b16 %v1156
        %v1189 = vunpack.c.l.b16 %v1157
        %v1190 = vunpack.c.l.b16 %v1158
        %v1191 = vunpack.c.l.b16 %v1159
        %v1192 = vunpack.c.l.b16 %v1160
        %v1193 = vpack.c.b16 %v1178, %v1177
        %v1194 = vpack.c.b16 %v1180, %v1179
        %v1195 = vpack.c.b16 %v1182, %v1181
        %v1196 = vpack.c.b16 %v1184, %v1183
        %v1197 = vpack.c.b16 %v1186, %v1185
        %v1198 = vpack.c.b16 %v1188, %v1187
        %v1199 = vpack.c.b16 %v1190, %v1189
        %v1200 = vpack.c.b16 %v1192, %v1191
        %1209 = vmatprep.subr.bf16.mxu0 0
        %1210 = vmatpush1.bf16.msra.mxu0 %v1200
        %1211 = vmatprep.subr.bf16.mxu0 0
        %1212 = vmatpush1.bf16.msra.mxu0 %v1199
        %1213 = vmatprep.subr.bf16.mxu0 0
        %1214 = vmatpush1.bf16.msra.mxu0 %v1198
        %1215 = vmatprep.subr.bf16.mxu0 0
        %1216 = vmatpush1.bf16.msra.mxu0 %v1197
        %1217 = vmatprep.subr.bf16.mxu0 0
        %1218 = vmatpush1.bf16.msra.mxu0 %v1196
        %1219 = vmatprep.subr.bf16.mxu0 0
        %1220 = vmatpush1.bf16.msra.mxu0 %v1195
        %1221 = vmatprep.subr.bf16.mxu0 0
        %1222 = vmatpush1.bf16.msra.mxu0 %v1194
        %1223 = vmatprep.subr.bf16.mxu0 0
        %1224 = vmatpush1.bf16.msra.mxu0 %v1193
        %1225 = vmatprep.subr.bf16.mxu0 0
        %1226 = vmatpush2.bf16.msra.mxu0 0
        %1227 = vmatprep.subr.bf16.mxu0 0
        %1228 = vmatpush2.bf16.msra.mxu0 0
        %1229 = vmatprep.subr.bf16.mxu0 0
        %1230 = vmatpush2.bf16.msra.mxu0 0
        %1231 = vmatprep.subr.bf16.mxu0 0
        %1232 = vmatpush2.bf16.msra.mxu0 0
        %1233 = vmatprep.subr.bf16.mxu0 0
        %1234 = vmatpush2.bf16.msra.mxu0 0
        %1235 = vmatprep.subr.bf16.mxu0 0
        %1236 = vmatpush2.bf16.msra.mxu0 0
        %1237 = vmatprep.subr.bf16.mxu0 0
        %1238 = vmatpush2.bf16.msra.mxu0 0
        %1239 = vmatprep.subr.bf16.mxu0 0
        %1240 = vmatpush2.bf16.msra.mxu0 0
        %1241 = vmatprep.mubr.bf16.mxu0 0
        %1242 = vmatmul.mubr.bf16.gmra.mxu0 %v1118
        %v1243 = vpop.f32.mrf.mxu0
        %v1244 = vadd.f32 0.0, %v1243
        %v1245 = vpop.f32.mrf.mxu0
        %v1246 = vpop.f32.mrf.mxu0
        %v1247 = vadd.f32 0.0, %v1246
        %v1248 = vpop.f32.mrf.mxu0
        %1249 = vmatprep.mubr.bf16.mxu0 0
        %1250 = vmatmul.mubr.bf16.gmra.mxu0 %v1119
        %v1251 = vpop.f32.mrf.mxu0
        %v1252 = vadd.f32 0.0, %v1251
        %v1253 = vpop.f32.mrf.mxu0
        %v1254 = vpop.f32.mrf.mxu0
        %v1255 = vadd.f32 0.0, %v1254
        %v1256 = vpop.f32.mrf.mxu0
        %1257 = vmatprep.mubr.bf16.mxu0 0
        %1258 = vmatmul.mubr.bf16.gmra.mxu0 %v1120
        %v1259 = vpop.f32.mrf.mxu0
        %v1260 = vadd.f32 0.0, %v1259
        %v1261 = vpop.f32.mrf.mxu0
        %v1262 = vpop.f32.mrf.mxu0
        %v1263 = vadd.f32 0.0, %v1262
        %v1264 = vpop.f32.mrf.mxu0
        %1265 = vmatprep.mubr.bf16.mxu0 0
        %1266 = vmatmul.mubr.bf16.gmra.mxu0 %v1121
        %v1267 = vpop.f32.mrf.mxu0
        %v1268 = vadd.f32 0.0, %v1267
        %v1269 = vpop.f32.mrf.mxu0
        %v1270 = vpop.f32.mrf.mxu0
        %v1271 = vadd.f32 0.0, %v1270
        %v1272 = vpop.f32.mrf.mxu0
        %1273 = vmatprep.mubr.bf16.mxu0 0
        %1274 = vmatmul.mubr.bf16.gmra.mxu0 %v1122
        %v1275 = vpop.f32.mrf.mxu0
        %v1276 = vadd.f32 0.0, %v1275
        %v1277 = vpop.f32.mrf.mxu0
        %v1278 = vpop.f32.mrf.mxu0
        %v1279 = vadd.f32 0.0, %v1278
        %v1280 = vpop.f32.mrf.mxu0
        %1281 = vmatprep.mubr.bf16.mxu0 0
        %1282 = vmatmul.mubr.bf16.gmra.mxu0 %v1123
        %v1283 = vpop.f32.mrf.mxu0
        %v1284 = vadd.f32 0.0, %v1283
        %v1285 = vpop.f32.mrf.mxu0
        %v1286 = vpop.f32.mrf.mxu0
        %v1287 = vadd.f32 0.0, %v1286
        %v1288 = vpop.f32.mrf.mxu0
        %1289 = vmatprep.mubr.bf16.mxu0 0
        %1290 = vmatmul.mubr.bf16.gmra.mxu0 %v1124
        %v1291 = vpop.f32.mrf.mxu0
        %v1292 = vadd.f32 0.0, %v1291
        %v1293 = vpop.f32.mrf.mxu0
        %v1294 = vpop.f32.mrf.mxu0
        %v1295 = vadd.f32 0.0, %v1294
        %v1296 = vpop.f32.mrf.mxu0
        %1297 = vmatprep.mubr.bf16.mxu0 0
        %1298 = vmatmul.mubr.bf16.gmra.mxu0 %v1125
        %v1299 = vpop.f32.mrf.mxu0
        %v1300 = vadd.f32 0.0, %v1299
        %v1301 = vpop.f32.mrf.mxu0
        %v1302 = vpop.f32.mrf.mxu0
        %v1303 = vadd.f32 0.0, %v1302
        %v1304 = vpop.f32.mrf.mxu0
        %1305 = vdwg.mxu0
        %v1306 = vadd.f32 %v1126, %v1244
        %v1307 = vadd.f32 %v1127, %v1247
        %v1308 = vadd.f32 %v1128, %v1252
        %v1309 = vadd.f32 %v1129, %v1255
        %v1310 = vadd.f32 %v1130, %v1260
        %v1311 = vadd.f32 %v1131, %v1263
        %v1312 = vadd.f32 %v1132, %v1268
        %v1313 = vadd.f32 %v1133, %v1271
        %v1314 = vadd.f32 %v1134, %v1276
        %v1315 = vadd.f32 %v1135, %v1279
        %v1316 = vadd.f32 %v1136, %v1284
        %v1317 = vadd.f32 %v1137, %v1287
        %v1318 = vadd.f32 %v1138, %v1292
        %v1319 = vadd.f32 %v1139, %v1295
        %v1320 = vadd.f32 %v1140, %v1300
        %v1321 = vadd.f32 %v1141, %v1303
        %1322 = vst [vmem:[#allocation2] sm:$0xff] %v1306
        %1323 = vst [vmem:[#allocation2 + $0x8] sm:$0xff] %v1307
        %1324 = vst [vmem:[#allocation2 + $0x10] sm:$0xff] %v1308
        %1325 = vst [vmem:[#allocation2 + $0x18] sm:$0xff] %v1309
        %1326 = vst [vmem:[#allocation2 + $0x20] sm:$0xff] %v1310
        %1327 = vst [vmem:[#allocation2 + $0x28] sm:$0xff] %v1311
        %1328 = vst [vmem:[#allocation2 + $0x30] sm:$0xff] %v1312
        %1329 = vst [vmem:[#allocation2 + $0x38] sm:$0xff] %v1313
        %1330 = vst [vmem:[#allocation2 + $0x40] sm:$0xff] %v1314
        %1331 = vst [vmem:[#allocation2 + $0x48] sm:$0xff] %v1315
        %1332 = vst [vmem:[#allocation2 + $0x50] sm:$0xff] %v1316
        %1333 = vst [vmem:[#allocation2 + $0x58] sm:$0xff] %v1317
        %1334 = vst [vmem:[#allocation2 + $0x60] sm:$0xff] %v1318
        %1335 = vst [vmem:[#allocation2 + $0x68] sm:$0xff] %v1319
        %1336 = vst [vmem:[#allocation2 + $0x70] sm:$0xff] %v1320
        %1337 = vst [vmem:[#allocation2 + $0x78] sm:$0xff] %v1321
      $region56: #{hetero_rgcn_forward.3} parent=47 // pred_fallthru
        _
      %p1338 = scmp.eq.s32.totalorder %s25, 2
      %p1339 = pnand %p393, %p1338
      %p1340 = pneg %p1339
      // Predicated region
      $region57: #{hetero_rgcn_forward.3} parent=47 // pred_check
        _
      $region58: #{hetero_rgcn_forward.3} parent=47 // pred_check_branch
        %1342 = sbr.rel (%p1339) target = $region60
      $region59: #{hetero_rgcn_forward.3} parent=47 // pred_region
        %v1343 = vld [vmem:[#allocation2] sm:$0xff]
        %v1344 = vld [vmem:[#allocation2 + $0x8] sm:$0xff]
        %v1345 = vld [vmem:[#allocation2 + $0x10] sm:$0xff]
        %v1346 = vld [vmem:[#allocation2 + $0x18] sm:$0xff]
        %v1347 = vld [vmem:[#allocation2 + $0x20] sm:$0xff]
        %v1348 = vld [vmem:[#allocation2 + $0x28] sm:$0xff]
        %v1349 = vld [vmem:[#allocation2 + $0x30] sm:$0xff]
        %v1350 = vld [vmem:[#allocation2 + $0x38] sm:$0xff]
        %v1351 = vld [vmem:[#allocation2 + $0x40] sm:$0xff]
        %v1352 = vld [vmem:[#allocation2 + $0x48] sm:$0xff]
        %v1353 = vld [vmem:[#allocation2 + $0x50] sm:$0xff]
        %v1354 = vld [vmem:[#allocation2 + $0x58] sm:$0xff]
        %v1355 = vld [vmem:[#allocation2 + $0x60] sm:$0xff]
        %v1356 = vld [vmem:[#allocation2 + $0x68] sm:$0xff]
        %v1357 = vld [vmem:[#allocation2 + $0x70] sm:$0xff]
        %v1358 = vld [vmem:[#allocation2 + $0x78] sm:$0xff]
        %v1359 = vmax.f32 %v1343, 0.0
        %v1360 = vmax.f32 %v1344, 0.0
        %v1361 = vmax.f32 %v1345, 0.0
        %v1362 = vmax.f32 %v1346, 0.0
        %v1363 = vmax.f32 %v1347, 0.0
        %v1364 = vmax.f32 %v1348, 0.0
        %v1365 = vmax.f32 %v1349, 0.0
        %v1366 = vmax.f32 %v1350, 0.0
        %v1367 = vmax.f32 %v1351, 0.0
        %v1368 = vmax.f32 %v1352, 0.0
        %v1369 = vmax.f32 %v1353, 0.0
        %v1370 = vmax.f32 %v1354, 0.0
        %v1371 = vmax.f32 %v1355, 0.0
        %v1372 = vmax.f32 %v1356, 0.0
        %v1373 = vmax.f32 %v1357, 0.0
        %v1374 = vmax.f32 %v1358, 0.0
        %v1375 = vpack.c.bf16 %v1360, %v1359
        %v1376 = vpack.c.bf16 %v1362, %v1361
        %v1377 = vpack.c.bf16 %v1364, %v1363
        %v1378 = vpack.c.bf16 %v1366, %v1365
        %v1379 = vpack.c.bf16 %v1368, %v1367
        %v1380 = vpack.c.bf16 %v1370, %v1369
        %v1381 = vpack.c.bf16 %v1372, %v1371
        %v1382 = vpack.c.bf16 %v1374, %v1373
        %v1391 = vunpack.c.l.b16 %v1375
        %v1392 = vunpack.c.h.b16 %v1375
        %v1393 = vunpack.c.l.b16 %v1376
        %v1394 = vunpack.c.h.b16 %v1376
        %v1395 = vunpack.c.l.b16 %v1377
        %v1396 = vunpack.c.h.b16 %v1377
        %v1397 = vunpack.c.l.b16 %v1378
        %v1398 = vunpack.c.h.b16 %v1378
        %v1399 = vunpack.c.l.b16 %v1379
        %v1400 = vunpack.c.h.b16 %v1379
        %v1401 = vunpack.c.l.b16 %v1380
        %v1402 = vunpack.c.h.b16 %v1380
        %v1403 = vunpack.c.l.b16 %v1381
        %v1404 = vunpack.c.h.b16 %v1381
        %v1405 = vunpack.c.l.b16 %v1382
        %v1406 = vunpack.c.h.b16 %v1382
        %v1407 = vpack.c.b16 %v1391, %v1391
        %v1408 = vpack.c.b16 %v1392, %v1392
        %v1409 = vpack.c.b16 %v1393, %v1393
        %v1410 = vpack.c.b16 %v1394, %v1394
        %v1411 = vpack.c.b16 %v1395, %v1395
        %v1412 = vpack.c.b16 %v1396, %v1396
        %v1413 = vpack.c.b16 %v1397, %v1397
        %v1414 = vpack.c.b16 %v1398, %v1398
        %v1415 = vpack.c.b16 %v1399, %v1399
        %v1416 = vpack.c.b16 %v1400, %v1400
        %v1417 = vpack.c.b16 %v1401, %v1401
        %v1418 = vpack.c.b16 %v1402, %v1402
        %v1419 = vpack.c.b16 %v1403, %v1403
        %v1420 = vpack.c.b16 %v1404, %v1404
        %v1421 = vpack.c.b16 %v1405, %v1405
        %v1422 = vpack.c.b16 %v1406, %v1406
        %1439 = vst [vmem:[%s390] sm:$0xf] %v1407
        %1440 = vst [vmem:[%s390 + $0x4] sm:$0xf] %v1408
        %1441 = vst [vmem:[%s390 + $0x8] sm:$0xf] %v1409
        %1442 = vst [vmem:[%s390 + $0xc] sm:$0xf] %v1410
        %1443 = vst [vmem:[%s390 + $0x10] sm:$0xf] %v1411
        %1444 = vst [vmem:[%s390 + $0x14] sm:$0xf] %v1412
        %1445 = vst [vmem:[%s390 + $0x18] sm:$0xf] %v1413
        %1446 = vst [vmem:[%s390 + $0x1c] sm:$0xf] %v1414
        %1447 = vst [vmem:[%s390 + $0x20] sm:$0xf] %v1415
        %1448 = vst [vmem:[%s390 + $0x24] sm:$0xf] %v1416
        %1449 = vst [vmem:[%s390 + $0x28] sm:$0xf] %v1417
        %1450 = vst [vmem:[%s390 + $0x2c] sm:$0xf] %v1418
        %1451 = vst [vmem:[%s390 + $0x30] sm:$0xf] %v1419
        %1452 = vst [vmem:[%s390 + $0x34] sm:$0xf] %v1420
        %1453 = vst [vmem:[%s390 + $0x38] sm:$0xf] %v1421
        %1454 = vst [vmem:[%s390 + $0x3c] sm:$0xf] %v1422
      $region60: #{hetero_rgcn_forward.3} parent=47 // pred_fallthru
        _
      %s1455 = smul.u32 16, %s23
      %p1456 = scmp.lt.s32.totalorder %s1455, 15
      %s1457 = scalar_select %p1456, %s1455, 15
      %s1458 = smul.addr %s1457, 4
      %s1459 = scalar_lea.vmem %s7, %s1458
      // Predicated region
      $region61: #{hetero_rgcn_forward.3} parent=47 // pred_check
        %p1460 = pneg %p226
      $region62: #{hetero_rgcn_forward.3} parent=47 // pred_check_branch
        %1462 = sbr.rel (%p1460) target = $region64
      $region63: #{hetero_rgcn_forward.3} parent=47 // pred_region
        %s1463 = smul.u32 16, %s23
      $region64: #{hetero_rgcn_forward.3} parent=47 // pred_fallthru
        _
      // Predicated region
      $region65: #{hetero_rgcn_forward.3} parent=47 // pred_check
        %p1464 = pneg %p226
      $region66: #{hetero_rgcn_forward.3} parent=47 // pred_check_branch
        %1466 = sbr.rel (%p1464) target = $region68
      $region67: #{hetero_rgcn_forward.3} parent=47 // pred_region
        %s1467 = smul.u32 16, %s23
        %p1468 = scmp.lt.s32.totalorder %s1467, 15
        %s1469 = scalar_select %p1468, %s1467, 15
        %s1470 = smul.addr %s1469, 4
        %s1471 = scalar_lea.vmem %s7, %s1470
      $region68: #{hetero_rgcn_forward.3} parent=47 // pred_fallthru
        _
    $region48: #{hetero_rgcn_forward.3} parent=5 // pred_fallthru
      _
    %p1472 = scmp.le.s32.totalorder 2, %s13
    // Predicated region
    $region69: #{hetero_rgcn_forward.3} parent=5 // pred_check
      %p1473 = pneg %p1472
    $region70: #{hetero_rgcn_forward.3} parent=5 // pred_check_branch
      %1475 = sbr.rel (%p1473) target = $region72
    $region71: #{hetero_rgcn_forward.3} parent=5 // pred_region
      %s1476 = ssub.s32 %s13, 2
    $region72: #{hetero_rgcn_forward.3} parent=5 // pred_fallthru
      _
  $region6: #{hetero_rgcn_forward.3} parent=0 // loop_footer
    %s17 = sadd.s32 1, %s13
  $region7: #{hetero_rgcn_forward.3} parent=0 // loop_footer_branch
    %12 = sbr.rel target = $region3
  $region8: #{hetero_rgcn_forward.3} parent=0 // loop_exit
    _

</llo_original>
